<compile_context>
chip_gen: v6e
topology: v6e:2x2x1
jax: 0.10.0
libtpu: 0.0.40
codegen_flags: <defaults>
</compile_context>

<pallas_src>
import numpy as np
import jax
import jax.numpy as jnp
from jax.experimental import pallas as pl
from jax.experimental.pallas import tpu as pltpu


# ----------------------------- fused KGMC kernel ------------------------------
def make_fused_kgmc_kernel(num_layers, num_bases, num_rel, latent,
                           n_nodes, n_pairs, multiply_by):
    """Whole KGMC eval forward as a single grid=(1,) kernel (all data resident in VMEM)."""

    def kernel(uid_ref, iid_ref, x_ref, a_ref, *rest):
        layer_refs = rest[: 2 * num_layers]          # (wpack, bias) per layer
        comp_ref = rest[2 * num_layers]              # SMEM, flat (L*R*B,)
        lw_ref = rest[2 * num_layers + 1]            # (sum_latent, 2) bf16
        lb_ref = rest[2 * num_layers + 2]            # SMEM, (1,)
        out_ref = rest[2 * num_layers + 3]           # (n_pairs, 1)

        a_bf = a_ref[...]                            # (N, R*N) bf16, loaded once
        h = x_ref[...].astype(jnp.float32)           # (N, Fin0)

        states = []
        for l in range(num_layers):
            wpack_ref = layer_refs[2 * l]
            bias_ref = layer_refs[2 * l + 1]
            fout = latent[l]

            # one fat X-side push: [h@w_loop | h@V_0 | ... | h@V_{B-1}]
            hp = jnp.dot(h.astype(jnp.bfloat16), wpack_ref[...],
                         preferred_element_type=jnp.float32)      # (N, (1+B)*Fout)
            self_part = hp[:, :fout]
            xv = [hp[:, (1 + b) * fout:(2 + b) * fout] for b in range(num_bases)]

            # M[r*N:(r+1)*N, :] = sum_b comp[r,b] * (h @ V_b)  ==  h @ W_r   (VPU scaled adds)
            pieces = []
            base = l * num_rel * num_bases
            for r in range(num_rel):
                piece = comp_ref[base + r * num_bases + 0] * xv[0]
                for b in range(1, num_bases):
                    piece = piece + comp_ref[base + r * num_bases + b] * xv[b]
                pieces.append(piece)
            m = jnp.concatenate(pieces, axis=0)                    # (R*N, Fout) f32

            # single deep-contraction aggregation push: sum_r A_r @ (h @ W_r)
            agg = jnp.dot(a_bf, m.astype(jnp.bfloat16),
                          preferred_element_type=jnp.float32)      # (N, Fout)

            h = jnp.tanh(agg + self_part + bias_ref[...])
            states.append(h)

        concat = jnp.concatenate(states, axis=1)                   # (N, sum_latent)

        # head reorder: one lane-dense (N, sum_latent) @ (sum_latent, 2) matmul,
        # then per-pair scalar selection of (uid, col0) / (iid, col1).
        scores = jnp.dot(concat.astype(jnp.bfloat16), lw_ref[...],
                         preferred_element_type=jnp.float32)       # (N, 2)

        node_iota = jax.lax.broadcasted_iota(jnp.int32, (n_nodes, 1), 0)
        pair_iota = jax.lax.broadcasted_iota(jnp.int32, (n_pairs, 1), 0)
        lb = lb_ref[0]

        z = jnp.zeros((n_pairs, 1), jnp.float32)
        for p in range(n_pairs):
            u = uid_ref[p]
            it = iid_ref[p]
            zu = jnp.sum(jnp.where(node_iota == u, scores[:, 0:1], 0.0))
            zi = jnp.sum(jnp.where(node_iota == it, scores[:, 1:2], 0.0))
            z = jnp.where(pair_iota == p, zu + zi, z)

        out_ref[...] = jax.nn.sigmoid(z + lb) * multiply_by

    return kernel


def kgmc_forward(x, a, params, user_idx, item_idx, multiply_by=1.0):
    num_layers = len(params["layers"])
    num_bases = params["layers"][0]["basis"].shape[0]
    num_rel = a.shape[0]
    n_nodes = a.shape[1]
    latent = [int(l["basis"].shape[2]) for l in params["layers"]]
    sum_latent = sum(latent)
    n_pairs = int(np.asarray(user_idx).shape[0])

    # shared adjacency passed ONCE, lane-dense:  a_perm[i, r*N + j] = a[r, i, j]
    a_perm = jnp.transpose(a, (1, 0, 2)).reshape(n_nodes, num_rel * n_nodes)
    a_perm = a_perm.astype(jnp.bfloat16)   # edge counts are small ints -> exact

    inputs = [x.astype(jnp.float32), a_perm]
    comp_list = []
    for layer in params["layers"]:
        wpack = jnp.concatenate(
            [layer["w_loop"]] + [layer["basis"][b] for b in range(num_bases)], axis=1
        ).astype(jnp.bfloat16)                                   # (Fin, (1+B)*Fout)
        inputs += [wpack, layer["bias"].astype(jnp.float32)]
        comp_list.append(layer["comp"].reshape(-1))
    comp_flat = jnp.concatenate(comp_list).astype(jnp.float32)   # (L*R*B,) -> SMEM

    lw = params["lin1_w"].astype(jnp.float32)                    # (2*sum_latent, 1)
    lw_pack = jnp.concatenate([lw[:sum_latent], lw[sum_latent:]], axis=1).astype(jnp.bfloat16)
    lin_b = params["lin1_b"].reshape(-1).astype(jnp.float32)     # (1,) -> SMEM
    inputs += [comp_flat, lw_pack, lin_b]

    uid = jnp.asarray(user_idx, jnp.int32).reshape(n_pairs)
    iid = jnp.asarray(item_idx, jnp.int32).reshape(n_pairs)

    def vmem_spec(arr):
        nd = arr.ndim

        def idx(i, *_):            # scalar-prefetch refs arrive as trailing args
            return (0,) * nd

        return pl.BlockSpec(arr.shape, idx)

    smem_spec = pl.BlockSpec(memory_space=pltpu.MemorySpace.SMEM)

    in_specs = [vmem_spec(inputs[0]), vmem_spec(inputs[1])]
    for l in range(num_layers):
        in_specs += [vmem_spec(inputs[2 + 2 * l]), vmem_spec(inputs[3 + 2 * l])]
    in_specs += [smem_spec, vmem_spec(lw_pack), smem_spec]

    kernel = make_fused_kgmc_kernel(num_layers, num_bases, num_rel, latent,
                                    n_nodes, n_pairs, float(multiply_by))
    out = pl.pallas_call(
        kernel,
        out_shape=jax.ShapeDtypeStruct((n_pairs, 1), jnp.float32),
        grid_spec=pltpu.PrefetchScalarGridSpec(
            num_scalar_prefetch=2,
            grid=(1,),
            in_specs=in_specs,
            out_specs=pl.BlockSpec((n_pairs, 1), lambda i, *_: (0, 0)),
        ),
        compiler_params=pltpu.CompilerParams(dimension_semantics=("arbitrary",)),
    )(uid, iid, *inputs)
    # regression=True path of the module: return x[:, 0] * multiply_by (extra "0, 0" outputs are glue)
    return out[:, 0]


# --------------------------- pure-JAX reference --------------------------------
def kgmc_ref(x, a, params, user_idx, item_idx, multiply_by=1.0):
    states = []
    h = x.astype(jnp.float32)
    for layer in params["layers"]:
        w_rel = jnp.einsum("rb,bio->rio", layer["comp"], layer["basis"])
        msg = jnp.einsum("rij,jf->rif", a, h)            # gather neighbors per rel
        agg = jnp.einsum("rif,rfo->io", msg, w_rel)
        h = jnp.tanh(agg + h @ layer["w_loop"] + layer["bias"])
        states.append(h)
    concat = jnp.concatenate(states, axis=1)
    pair = jnp.concatenate([concat[user_idx], concat[item_idx]], 1)
    out = jax.nn.sigmoid(pair @ params["lin1_w"] + params["lin1_b"])
    return out[:, 0] * multiply_by


if __name__ == "__main__":
    # ----- small deterministic problem -----
    N = 16            # nodes in the subgraph
    IN_FEATS = 8      # node feature dim
    LATENT = [32, 32, 32, 32]
    R = 8             # num_relations
    NUM_BASES = 2
    MULTIPLY_BY = 1.0

    # deterministic graph structure; densified to A[r, dst, src] = #edges src->dst of rel r,
    # so RelGraphConv aggregation sum_{j in N_r(i)} W_r x_j becomes (A[r] @ (X @ W_r))[i].
    g = np.random.default_rng(0)
    E = 64
    src = g.integers(0, N, E)
    dst = g.integers(0, N, E)
    etype = g.integers(0, R, E)
    A_np = np.zeros((R, N, N), dtype=np.float32)
    np.add.at(A_np, (etype, dst, src), 1.0)
    a = jnp.asarray(A_np)

    # node labels: nodes 0,8 are target users, nodes 1,9 are target items
    user_idx = np.array([0, 8], dtype=np.int32)
    item_idx = np.array([1, 9], dtype=np.int32)

    # ----- deterministic parameters -----
    key = jax.random.PRNGKey(0)
    params = {"layers": []}
    fin = IN_FEATS
    for fout in LATENT:
        key, k1, k2, k3, k4 = jax.random.split(key, 5)
        params["layers"].append(
            {
                "basis": 0.1 * jax.random.normal(k1, (NUM_BASES, fin, fout), jnp.float32),
                "comp": 0.1 * jax.random.normal(k2, (R, NUM_BASES), jnp.float32),
                "w_loop": 0.1 * jax.random.normal(k3, (fin, fout), jnp.float32),
                "bias": 0.1 * jax.random.normal(k4, (1, fout), jnp.float32),
            }
        )
        fin = fout
    key, k1, k2, kx = jax.random.split(key, 4)
    params["lin1_w"] = 0.1 * jax.random.normal(k1, (2 * sum(LATENT), 1), jnp.float32)
    params["lin1_b"] = 0.1 * jax.random.normal(k2, (1, 1), jnp.float32)

    # node features (subg.ndata['x'])
    x = jax.random.normal(kx, (N, IN_FEATS), jnp.float32)

    out = kgmc_forward(x, a, params, user_idx, item_idx, MULTIPLY_BY)
    out = jax.block_until_ready(out)

    ref = jax.block_until_ready(kgmc_ref(x, a, params, user_idx, item_idx, MULTIPLY_BY))
    assert out.shape == (len(user_idx),)
    # bf16 MXU operands (f32 accumulation) -> tolerance loosened per review
    assert np.allclose(np.asarray(out), np.asarray(ref), atol=1e-2, rtol=1e-2)

    print("KERNEL_OK")
</pallas_src>

<mosaic_0001>
module attributes {stable_mosaic.version = 11 : i64} {
  func.func @kernel(%arg0: i32, %arg1: memref<2xi32, #tpu.memory_space<smem>>, %arg2: memref<2xi32, #tpu.memory_space<smem>>, %arg3: memref<16x8xf32, #tpu.memory_space<vmem>>, %arg4: memref<16x128xbf16, #tpu.memory_space<vmem>>, %arg5: memref<8x96xbf16, #tpu.memory_space<vmem>>, %arg6: memref<1x32xf32, #tpu.memory_space<vmem>>, %arg7: memref<32x96xbf16, #tpu.memory_space<vmem>>, %arg8: memref<1x32xf32, #tpu.memory_space<vmem>>, %arg9: memref<32x96xbf16, #tpu.memory_space<vmem>>, %arg10: memref<1x32xf32, #tpu.memory_space<vmem>>, %arg11: memref<32x96xbf16, #tpu.memory_space<vmem>>, %arg12: memref<1x32xf32, #tpu.memory_space<vmem>>, %arg13: memref<64xf32, #tpu.memory_space<smem>>, %arg14: memref<128x2xbf16, #tpu.memory_space<vmem>>, %arg15: memref<1xf32, #tpu.memory_space<smem>>, %arg16: memref<2x1xf32, #tpu.memory_space<vmem>>) attributes {dimension_semantics = [#tpu.dimension_semantics<arbitrary>], iteration_bounds = array<i64: 1>, scalar_prefetch = 2 : i64, scratch_operands = 0 : i64, tpu.core_type = #tpu.core_type<tc>, window_params = [{pipeline_mode = #tpu.pipeline_mode<synchronous>, transform_indices = @transform_0, window_bounds = array<i64: 16, 8>}, {pipeline_mode = #tpu.pipeline_mode<synchronous>, transform_indices = @transform_1, window_bounds = array<i64: 16, 128>}, {pipeline_mode = #tpu.pipeline_mode<synchronous>, transform_indices = @transform_2, window_bounds = array<i64: 8, 96>}, {pipeline_mode = #tpu.pipeline_mode<synchronous>, transform_indices = @transform_3, window_bounds = array<i64: 1, 32>}, {pipeline_mode = #tpu.pipeline_mode<synchronous>, transform_indices = @transform_4, window_bounds = array<i64: 32, 96>}, {pipeline_mode = #tpu.pipeline_mode<synchronous>, transform_indices = @transform_5, window_bounds = array<i64: 1, 32>}, {pipeline_mode = #tpu.pipeline_mode<synchronous>, transform_indices = @transform_6, window_bounds = array<i64: 32, 96>}, {pipeline_mode = #tpu.pipeline_mode<synchronous>, transform_indices = @transform_7, window_bounds = array<i64: 1, 32>}, {pipeline_mode = #tpu.pipeline_mode<synchronous>, transform_indices = @transform_8, window_bounds = array<i64: 32, 96>}, {pipeline_mode = #tpu.pipeline_mode<synchronous>, transform_indices = @transform_9, window_bounds = array<i64: 1, 32>}, {transform_indices = @transform_10, window_bounds = array<i64: 64>}, {pipeline_mode = #tpu.pipeline_mode<synchronous>, transform_indices = @transform_11, window_bounds = array<i64: 128, 2>}, {transform_indices = @transform_12, window_bounds = array<i64: 1>}, {pipeline_mode = #tpu.pipeline_mode<synchronous>, transform_indices = @transform_13, window_bounds = array<i64: 2, 1>}]} {
    %c0 = arith.constant 0 : index
    %c0_0 = arith.constant 0 : index
    %0 = vector.load %arg4[%c0, %c0_0] : memref<16x128xbf16, #tpu.memory_space<vmem>>, vector<16x128xbf16>
    %c0_1 = arith.constant 0 : index
    %c0_2 = arith.constant 0 : index
    %1 = vector.load %arg3[%c0_1, %c0_2] : memref<16x8xf32, #tpu.memory_space<vmem>>, vector<16x8xf32>
    %2 = arith.truncf %1 : vector<16x8xf32> to vector<16x8xbf16>
    %c0_3 = arith.constant 0 : index
    %c0_4 = arith.constant 0 : index
    %3 = vector.load %arg5[%c0_3, %c0_4] : memref<8x96xbf16, #tpu.memory_space<vmem>>, vector<8x96xbf16>
    %cst = arith.constant dense<0.000000e+00> : vector<16x96xf32>
    %4 = tpu.matmul %2, %3, %cst {dimension_numbers = #tpu.dot_dimension_numbers<[1], [0], [0], [1], [0, 0, 1, 1], [], []>} : vector<16x8xbf16>, vector<8x96xbf16>, vector<16x96xf32> -> vector<16x96xf32>
    %5 = vector.extract_strided_slice %4 {offsets = [0, 0], sizes = [16, 32], strides = [1, 1]} : vector<16x96xf32> to vector<16x32xf32>
    %6 = vector.extract_strided_slice %4 {offsets = [0, 32], sizes = [16, 32], strides = [1, 1]} : vector<16x96xf32> to vector<16x32xf32>
    %7 = vector.extract_strided_slice %4 {offsets = [0, 64], sizes = [16, 32], strides = [1, 1]} : vector<16x96xf32> to vector<16x32xf32>
    %c0_5 = arith.constant 0 : index
    %8 = memref.load %arg13[%c0_5] : memref<64xf32, #tpu.memory_space<smem>>
    %9 = vector.broadcast %8 : f32 to vector<16x32xf32>
    %10 = arith.mulf %9, %6 : vector<16x32xf32>
    %c1 = arith.constant 1 : index
    %11 = memref.load %arg13[%c1] : memref<64xf32, #tpu.memory_space<smem>>
    %12 = vector.broadcast %11 : f32 to vector<16x32xf32>
    %13 = arith.mulf %12, %7 : vector<16x32xf32>
    %14 = arith.addf %10, %13 : vector<16x32xf32>
    %c2 = arith.constant 2 : index
    %15 = memref.load %arg13[%c2] : memref<64xf32, #tpu.memory_space<smem>>
    %16 = vector.broadcast %15 : f32 to vector<16x32xf32>
    %17 = arith.mulf %16, %6 : vector<16x32xf32>
    %c3 = arith.constant 3 : index
    %18 = memref.load %arg13[%c3] : memref<64xf32, #tpu.memory_space<smem>>
    %19 = vector.broadcast %18 : f32 to vector<16x32xf32>
    %20 = arith.mulf %19, %7 : vector<16x32xf32>
    %21 = arith.addf %17, %20 : vector<16x32xf32>
    %c4 = arith.constant 4 : index
    %22 = memref.load %arg13[%c4] : memref<64xf32, #tpu.memory_space<smem>>
    %23 = vector.broadcast %22 : f32 to vector<16x32xf32>
    %24 = arith.mulf %23, %6 : vector<16x32xf32>
    %c5 = arith.constant 5 : index
    %25 = memref.load %arg13[%c5] : memref<64xf32, #tpu.memory_space<smem>>
    %26 = vector.broadcast %25 : f32 to vector<16x32xf32>
    %27 = arith.mulf %26, %7 : vector<16x32xf32>
    %28 = arith.addf %24, %27 : vector<16x32xf32>
    %c6 = arith.constant 6 : index
    %29 = memref.load %arg13[%c6] : memref<64xf32, #tpu.memory_space<smem>>
    %30 = vector.broadcast %29 : f32 to vector<16x32xf32>
    %31 = arith.mulf %30, %6 : vector<16x32xf32>
    %c7 = arith.constant 7 : index
    %32 = memref.load %arg13[%c7] : memref<64xf32, #tpu.memory_space<smem>>
    %33 = vector.broadcast %32 : f32 to vector<16x32xf32>
    %34 = arith.mulf %33, %7 : vector<16x32xf32>
    %35 = arith.addf %31, %34 : vector<16x32xf32>
    %c8 = arith.constant 8 : index
    %36 = memref.load %arg13[%c8] : memref<64xf32, #tpu.memory_space<smem>>
    %37 = vector.broadcast %36 : f32 to vector<16x32xf32>
    %38 = arith.mulf %37, %6 : vector<16x32xf32>
    %c9 = arith.constant 9 : index
    %39 = memref.load %arg13[%c9] : memref<64xf32, #tpu.memory_space<smem>>
    %40 = vector.broadcast %39 : f32 to vector<16x32xf32>
    %41 = arith.mulf %40, %7 : vector<16x32xf32>
    %42 = arith.addf %38, %41 : vector<16x32xf32>
    %c10 = arith.constant 10 : index
    %43 = memref.load %arg13[%c10] : memref<64xf32, #tpu.memory_space<smem>>
    %44 = vector.broadcast %43 : f32 to vector<16x32xf32>
    %45 = arith.mulf %44, %6 : vector<16x32xf32>
    %c11 = arith.constant 11 : index
    %46 = memref.load %arg13[%c11] : memref<64xf32, #tpu.memory_space<smem>>
    %47 = vector.broadcast %46 : f32 to vector<16x32xf32>
    %48 = arith.mulf %47, %7 : vector<16x32xf32>
    %49 = arith.addf %45, %48 : vector<16x32xf32>
    %c12 = arith.constant 12 : index
    %50 = memref.load %arg13[%c12] : memref<64xf32, #tpu.memory_space<smem>>
    %51 = vector.broadcast %50 : f32 to vector<16x32xf32>
    %52 = arith.mulf %51, %6 : vector<16x32xf32>
    %c13 = arith.constant 13 : index
    %53 = memref.load %arg13[%c13] : memref<64xf32, #tpu.memory_space<smem>>
    %54 = vector.broadcast %53 : f32 to vector<16x32xf32>
    %55 = arith.mulf %54, %7 : vector<16x32xf32>
    %56 = arith.addf %52, %55 : vector<16x32xf32>
    %c14 = arith.constant 14 : index
    %57 = memref.load %arg13[%c14] : memref<64xf32, #tpu.memory_space<smem>>
    %58 = vector.broadcast %57 : f32 to vector<16x32xf32>
    %59 = arith.mulf %58, %6 : vector<16x32xf32>
    %c15 = arith.constant 15 : index
    %60 = memref.load %arg13[%c15] : memref<64xf32, #tpu.memory_space<smem>>
    %61 = vector.broadcast %60 : f32 to vector<16x32xf32>
    %62 = arith.mulf %61, %7 : vector<16x32xf32>
    %63 = arith.addf %59, %62 : vector<16x32xf32>
    %64 = tpu.concatenate %14, %21, %28, %35, %42, %49, %56, %63 in 0 : vector<16x32xf32>, vector<16x32xf32>, vector<16x32xf32>, vector<16x32xf32>, vector<16x32xf32>, vector<16x32xf32>, vector<16x32xf32>, vector<16x32xf32> -> vector<128x32xf32>
    %65 = arith.truncf %64 : vector<128x32xf32> to vector<128x32xbf16>
    %cst_6 = arith.constant dense<0.000000e+00> : vector<16x32xf32>
    %66 = tpu.matmul %0, %65, %cst_6 {dimension_numbers = #tpu.dot_dimension_numbers<[1], [0], [0], [1], [0, 0, 1, 1], [], []>} : vector<16x128xbf16>, vector<128x32xbf16>, vector<16x32xf32> -> vector<16x32xf32>
    %67 = arith.addf %66, %5 : vector<16x32xf32>
    %c0_7 = arith.constant 0 : index
    %c0_8 = arith.constant 0 : index
    %68 = vector.load %arg6[%c0_7, %c0_8] : memref<1x32xf32, #tpu.memory_space<vmem>>, vector<1x32xf32>
    %69 = vector.broadcast %68 : vector<1x32xf32> to vector<16x32xf32>
    %70 = arith.addf %67, %69 : vector<16x32xf32>
    %71 = math.tanh %70 : vector<16x32xf32>
    %72 = arith.truncf %71 : vector<16x32xf32> to vector<16x32xbf16>
    %c0_9 = arith.constant 0 : index
    %c0_10 = arith.constant 0 : index
    %73 = vector.load %arg7[%c0_9, %c0_10] : memref<32x96xbf16, #tpu.memory_space<vmem>>, vector<32x96xbf16>
    %cst_11 = arith.constant dense<0.000000e+00> : vector<16x96xf32>
    %74 = tpu.matmul %72, %73, %cst_11 {dimension_numbers = #tpu.dot_dimension_numbers<[1], [0], [0], [1], [0, 0, 1, 1], [], []>} : vector<16x32xbf16>, vector<32x96xbf16>, vector<16x96xf32> -> vector<16x96xf32>
    %75 = vector.extract_strided_slice %74 {offsets = [0, 0], sizes = [16, 32], strides = [1, 1]} : vector<16x96xf32> to vector<16x32xf32>
    %76 = vector.extract_strided_slice %74 {offsets = [0, 32], sizes = [16, 32], strides = [1, 1]} : vector<16x96xf32> to vector<16x32xf32>
    %77 = vector.extract_strided_slice %74 {offsets = [0, 64], sizes = [16, 32], strides = [1, 1]} : vector<16x96xf32> to vector<16x32xf32>
    %c16 = arith.constant 16 : index
    %78 = memref.load %arg13[%c16] : memref<64xf32, #tpu.memory_space<smem>>
    %79 = vector.broadcast %78 : f32 to vector<16x32xf32>
    %80 = arith.mulf %79, %76 : vector<16x32xf32>
    %c17 = arith.constant 17 : index
    %81 = memref.load %arg13[%c17] : memref<64xf32, #tpu.memory_space<smem>>
    %82 = vector.broadcast %81 : f32 to vector<16x32xf32>
    %83 = arith.mulf %82, %77 : vector<16x32xf32>
    %84 = arith.addf %80, %83 : vector<16x32xf32>
    %c18 = arith.constant 18 : index
    %85 = memref.load %arg13[%c18] : memref<64xf32, #tpu.memory_space<smem>>
    %86 = vector.broadcast %85 : f32 to vector<16x32xf32>
    %87 = arith.mulf %86, %76 : vector<16x32xf32>
    %c19 = arith.constant 19 : index
    %88 = memref.load %arg13[%c19] : memref<64xf32, #tpu.memory_space<smem>>
    %89 = vector.broadcast %88 : f32 to vector<16x32xf32>
    %90 = arith.mulf %89, %77 : vector<16x32xf32>
    %91 = arith.addf %87, %90 : vector<16x32xf32>
    %c20 = arith.constant 20 : index
    %92 = memref.load %arg13[%c20] : memref<64xf32, #tpu.memory_space<smem>>
    %93 = vector.broadcast %92 : f32 to vector<16x32xf32>
    %94 = arith.mulf %93, %76 : vector<16x32xf32>
    %c21 = arith.constant 21 : index
    %95 = memref.load %arg13[%c21] : memref<64xf32, #tpu.memory_space<smem>>
    %96 = vector.broadcast %95 : f32 to vector<16x32xf32>
    %97 = arith.mulf %96, %77 : vector<16x32xf32>
    %98 = arith.addf %94, %97 : vector<16x32xf32>
    %c22 = arith.constant 22 : index
    %99 = memref.load %arg13[%c22] : memref<64xf32, #tpu.memory_space<smem>>
    %100 = vector.broadcast %99 : f32 to vector<16x32xf32>
    %101 = arith.mulf %100, %76 : vector<16x32xf32>
    %c23 = arith.constant 23 : index
    %102 = memref.load %arg13[%c23] : memref<64xf32, #tpu.memory_space<smem>>
    %103 = vector.broadcast %102 : f32 to vector<16x32xf32>
    %104 = arith.mulf %103, %77 : vector<16x32xf32>
    %105 = arith.addf %101, %104 : vector<16x32xf32>
    %c24 = arith.constant 24 : index
    %106 = memref.load %arg13[%c24] : memref<64xf32, #tpu.memory_space<smem>>
    %107 = vector.broadcast %106 : f32 to vector<16x32xf32>
    %108 = arith.mulf %107, %76 : vector<16x32xf32>
    %c25 = arith.constant 25 : index
    %109 = memref.load %arg13[%c25] : memref<64xf32, #tpu.memory_space<smem>>
    %110 = vector.broadcast %109 : f32 to vector<16x32xf32>
    %111 = arith.mulf %110, %77 : vector<16x32xf32>
    %112 = arith.addf %108, %111 : vector<16x32xf32>
    %c26 = arith.constant 26 : index
    %113 = memref.load %arg13[%c26] : memref<64xf32, #tpu.memory_space<smem>>
    %114 = vector.broadcast %113 : f32 to vector<16x32xf32>
    %115 = arith.mulf %114, %76 : vector<16x32xf32>
    %c27 = arith.constant 27 : index
    %116 = memref.load %arg13[%c27] : memref<64xf32, #tpu.memory_space<smem>>
    %117 = vector.broadcast %116 : f32 to vector<16x32xf32>
    %118 = arith.mulf %117, %77 : vector<16x32xf32>
    %119 = arith.addf %115, %118 : vector<16x32xf32>
    %c28 = arith.constant 28 : index
    %120 = memref.load %arg13[%c28] : memref<64xf32, #tpu.memory_space<smem>>
    %121 = vector.broadcast %120 : f32 to vector<16x32xf32>
    %122 = arith.mulf %121, %76 : vector<16x32xf32>
    %c29 = arith.constant 29 : index
    %123 = memref.load %arg13[%c29] : memref<64xf32, #tpu.memory_space<smem>>
    %124 = vector.broadcast %123 : f32 to vector<16x32xf32>
    %125 = arith.mulf %124, %77 : vector<16x32xf32>
    %126 = arith.addf %122, %125 : vector<16x32xf32>
    %c30 = arith.constant 30 : index
    %127 = memref.load %arg13[%c30] : memref<64xf32, #tpu.memory_space<smem>>
    %128 = vector.broadcast %127 : f32 to vector<16x32xf32>
    %129 = arith.mulf %128, %76 : vector<16x32xf32>
    %c31 = arith.constant 31 : index
    %130 = memref.load %arg13[%c31] : memref<64xf32, #tpu.memory_space<smem>>
    %131 = vector.broadcast %130 : f32 to vector<16x32xf32>
    %132 = arith.mulf %131, %77 : vector<16x32xf32>
    %133 = arith.addf %129, %132 : vector<16x32xf32>
    %134 = tpu.concatenate %84, %91, %98, %105, %112, %119, %126, %133 in 0 : vector<16x32xf32>, vector<16x32xf32>, vector<16x32xf32>, vector<16x32xf32>, vector<16x32xf32>, vector<16x32xf32>, vector<16x32xf32>, vector<16x32xf32> -> vector<128x32xf32>
    %135 = arith.truncf %134 : vector<128x32xf32> to vector<128x32xbf16>
    %cst_12 = arith.constant dense<0.000000e+00> : vector<16x32xf32>
    %136 = tpu.matmul %0, %135, %cst_12 {dimension_numbers = #tpu.dot_dimension_numbers<[1], [0], [0], [1], [0, 0, 1, 1], [], []>} : vector<16x128xbf16>, vector<128x32xbf16>, vector<16x32xf32> -> vector<16x32xf32>
    %137 = arith.addf %136, %75 : vector<16x32xf32>
    %c0_13 = arith.constant 0 : index
    %c0_14 = arith.constant 0 : index
    %138 = vector.load %arg8[%c0_13, %c0_14] : memref<1x32xf32, #tpu.memory_space<vmem>>, vector<1x32xf32>
    %139 = vector.broadcast %138 : vector<1x32xf32> to vector<16x32xf32>
    %140 = arith.addf %137, %139 : vector<16x32xf32>
    %141 = math.tanh %140 : vector<16x32xf32>
    %142 = arith.truncf %141 : vector<16x32xf32> to vector<16x32xbf16>
    %c0_15 = arith.constant 0 : index
    %c0_16 = arith.constant 0 : index
    %143 = vector.load %arg9[%c0_15, %c0_16] : memref<32x96xbf16, #tpu.memory_space<vmem>>, vector<32x96xbf16>
    %cst_17 = arith.constant dense<0.000000e+00> : vector<16x96xf32>
    %144 = tpu.matmul %142, %143, %cst_17 {dimension_numbers = #tpu.dot_dimension_numbers<[1], [0], [0], [1], [0, 0, 1, 1], [], []>} : vector<16x32xbf16>, vector<32x96xbf16>, vector<16x96xf32> -> vector<16x96xf32>
    %145 = vector.extract_strided_slice %144 {offsets = [0, 0], sizes = [16, 32], strides = [1, 1]} : vector<16x96xf32> to vector<16x32xf32>
    %146 = vector.extract_strided_slice %144 {offsets = [0, 32], sizes = [16, 32], strides = [1, 1]} : vector<16x96xf32> to vector<16x32xf32>
    %147 = vector.extract_strided_slice %144 {offsets = [0, 64], sizes = [16, 32], strides = [1, 1]} : vector<16x96xf32> to vector<16x32xf32>
    %c32 = arith.constant 32 : index
    %148 = memref.load %arg13[%c32] : memref<64xf32, #tpu.memory_space<smem>>
    %149 = vector.broadcast %148 : f32 to vector<16x32xf32>
    %150 = arith.mulf %149, %146 : vector<16x32xf32>
    %c33 = arith.constant 33 : index
    %151 = memref.load %arg13[%c33] : memref<64xf32, #tpu.memory_space<smem>>
    %152 = vector.broadcast %151 : f32 to vector<16x32xf32>
    %153 = arith.mulf %152, %147 : vector<16x32xf32>
    %154 = arith.addf %150, %153 : vector<16x32xf32>
    %c34 = arith.constant 34 : index
    %155 = memref.load %arg13[%c34] : memref<64xf32, #tpu.memory_space<smem>>
    %156 = vector.broadcast %155 : f32 to vector<16x32xf32>
    %157 = arith.mulf %156, %146 : vector<16x32xf32>
    %c35 = arith.constant 35 : index
    %158 = memref.load %arg13[%c35] : memref<64xf32, #tpu.memory_space<smem>>
    %159 = vector.broadcast %158 : f32 to vector<16x32xf32>
    %160 = arith.mulf %159, %147 : vector<16x32xf32>
    %161 = arith.addf %157, %160 : vector<16x32xf32>
    %c36 = arith.constant 36 : index
    %162 = memref.load %arg13[%c36] : memref<64xf32, #tpu.memory_space<smem>>
    %163 = vector.broadcast %162 : f32 to vector<16x32xf32>
    %164 = arith.mulf %163, %146 : vector<16x32xf32>
    %c37 = arith.constant 37 : index
    %165 = memref.load %arg13[%c37] : memref<64xf32, #tpu.memory_space<smem>>
    %166 = vector.broadcast %165 : f32 to vector<16x32xf32>
    %167 = arith.mulf %166, %147 : vector<16x32xf32>
    %168 = arith.addf %164, %167 : vector<16x32xf32>
    %c38 = arith.constant 38 : index
    %169 = memref.load %arg13[%c38] : memref<64xf32, #tpu.memory_space<smem>>
    %170 = vector.broadcast %169 : f32 to vector<16x32xf32>
    %171 = arith.mulf %170, %146 : vector<16x32xf32>
    %c39 = arith.constant 39 : index
    %172 = memref.load %arg13[%c39] : memref<64xf32, #tpu.memory_space<smem>>
    %173 = vector.broadcast %172 : f32 to vector<16x32xf32>
    %174 = arith.mulf %173, %147 : vector<16x32xf32>
    %175 = arith.addf %171, %174 : vector<16x32xf32>
    %c40 = arith.constant 40 : index
    %176 = memref.load %arg13[%c40] : memref<64xf32, #tpu.memory_space<smem>>
    %177 = vector.broadcast %176 : f32 to vector<16x32xf32>
    %178 = arith.mulf %177, %146 : vector<16x32xf32>
    %c41 = arith.constant 41 : index
    %179 = memref.load %arg13[%c41] : memref<64xf32, #tpu.memory_space<smem>>
    %180 = vector.broadcast %179 : f32 to vector<16x32xf32>
    %181 = arith.mulf %180, %147 : vector<16x32xf32>
    %182 = arith.addf %178, %181 : vector<16x32xf32>
    %c42 = arith.constant 42 : index
    %183 = memref.load %arg13[%c42] : memref<64xf32, #tpu.memory_space<smem>>
    %184 = vector.broadcast %183 : f32 to vector<16x32xf32>
    %185 = arith.mulf %184, %146 : vector<16x32xf32>
    %c43 = arith.constant 43 : index
    %186 = memref.load %arg13[%c43] : memref<64xf32, #tpu.memory_space<smem>>
    %187 = vector.broadcast %186 : f32 to vector<16x32xf32>
    %188 = arith.mulf %187, %147 : vector<16x32xf32>
    %189 = arith.addf %185, %188 : vector<16x32xf32>
    %c44 = arith.constant 44 : index
    %190 = memref.load %arg13[%c44] : memref<64xf32, #tpu.memory_space<smem>>
    %191 = vector.broadcast %190 : f32 to vector<16x32xf32>
    %192 = arith.mulf %191, %146 : vector<16x32xf32>
    %c45 = arith.constant 45 : index
    %193 = memref.load %arg13[%c45] : memref<64xf32, #tpu.memory_space<smem>>
    %194 = vector.broadcast %193 : f32 to vector<16x32xf32>
    %195 = arith.mulf %194, %147 : vector<16x32xf32>
    %196 = arith.addf %192, %195 : vector<16x32xf32>
    %c46 = arith.constant 46 : index
    %197 = memref.load %arg13[%c46] : memref<64xf32, #tpu.memory_space<smem>>
    %198 = vector.broadcast %197 : f32 to vector<16x32xf32>
    %199 = arith.mulf %198, %146 : vector<16x32xf32>
    %c47 = arith.constant 47 : index
    %200 = memref.load %arg13[%c47] : memref<64xf32, #tpu.memory_space<smem>>
    %201 = vector.broadcast %200 : f32 to vector<16x32xf32>
    %202 = arith.mulf %201, %147 : vector<16x32xf32>
    %203 = arith.addf %199, %202 : vector<16x32xf32>
    %204 = tpu.concatenate %154, %161, %168, %175, %182, %189, %196, %203 in 0 : vector<16x32xf32>, vector<16x32xf32>, vector<16x32xf32>, vector<16x32xf32>, vector<16x32xf32>, vector<16x32xf32>, vector<16x32xf32>, vector<16x32xf32> -> vector<128x32xf32>
    %205 = arith.truncf %204 : vector<128x32xf32> to vector<128x32xbf16>
    %cst_18 = arith.constant dense<0.000000e+00> : vector<16x32xf32>
    %206 = tpu.matmul %0, %205, %cst_18 {dimension_numbers = #tpu.dot_dimension_numbers<[1], [0], [0], [1], [0, 0, 1, 1], [], []>} : vector<16x128xbf16>, vector<128x32xbf16>, vector<16x32xf32> -> vector<16x32xf32>
    %207 = arith.addf %206, %145 : vector<16x32xf32>
    %c0_19 = arith.constant 0 : index
    %c0_20 = arith.constant 0 : index
    %208 = vector.load %arg10[%c0_19, %c0_20] : memref<1x32xf32, #tpu.memory_space<vmem>>, vector<1x32xf32>
    %209 = vector.broadcast %208 : vector<1x32xf32> to vector<16x32xf32>
    %210 = arith.addf %207, %209 : vector<16x32xf32>
    %211 = math.tanh %210 : vector<16x32xf32>
    %212 = arith.truncf %211 : vector<16x32xf32> to vector<16x32xbf16>
    %c0_21 = arith.constant 0 : index
    %c0_22 = arith.constant 0 : index
    %213 = vector.load %arg11[%c0_21, %c0_22] : memref<32x96xbf16, #tpu.memory_space<vmem>>, vector<32x96xbf16>
    %cst_23 = arith.constant dense<0.000000e+00> : vector<16x96xf32>
    %214 = tpu.matmul %212, %213, %cst_23 {dimension_numbers = #tpu.dot_dimension_numbers<[1], [0], [0], [1], [0, 0, 1, 1], [], []>} : vector<16x32xbf16>, vector<32x96xbf16>, vector<16x96xf32> -> vector<16x96xf32>
    %215 = vector.extract_strided_slice %214 {offsets = [0, 0], sizes = [16, 32], strides = [1, 1]} : vector<16x96xf32> to vector<16x32xf32>
    %216 = vector.extract_strided_slice %214 {offsets = [0, 32], sizes = [16, 32], strides = [1, 1]} : vector<16x96xf32> to vector<16x32xf32>
    %217 = vector.extract_strided_slice %214 {offsets = [0, 64], sizes = [16, 32], strides = [1, 1]} : vector<16x96xf32> to vector<16x32xf32>
    %c48 = arith.constant 48 : index
    %218 = memref.load %arg13[%c48] : memref<64xf32, #tpu.memory_space<smem>>
    %219 = vector.broadcast %218 : f32 to vector<16x32xf32>
    %220 = arith.mulf %219, %216 : vector<16x32xf32>
    %c49 = arith.constant 49 : index
    %221 = memref.load %arg13[%c49] : memref<64xf32, #tpu.memory_space<smem>>
    %222 = vector.broadcast %221 : f32 to vector<16x32xf32>
    %223 = arith.mulf %222, %217 : vector<16x32xf32>
    %224 = arith.addf %220, %223 : vector<16x32xf32>
    %c50 = arith.constant 50 : index
    %225 = memref.load %arg13[%c50] : memref<64xf32, #tpu.memory_space<smem>>
    %226 = vector.broadcast %225 : f32 to vector<16x32xf32>
    %227 = arith.mulf %226, %216 : vector<16x32xf32>
    %c51 = arith.constant 51 : index
    %228 = memref.load %arg13[%c51] : memref<64xf32, #tpu.memory_space<smem>>
    %229 = vector.broadcast %228 : f32 to vector<16x32xf32>
    %230 = arith.mulf %229, %217 : vector<16x32xf32>
    %231 = arith.addf %227, %230 : vector<16x32xf32>
    %c52 = arith.constant 52 : index
    %232 = memref.load %arg13[%c52] : memref<64xf32, #tpu.memory_space<smem>>
    %233 = vector.broadcast %232 : f32 to vector<16x32xf32>
    %234 = arith.mulf %233, %216 : vector<16x32xf32>
    %c53 = arith.constant 53 : index
    %235 = memref.load %arg13[%c53] : memref<64xf32, #tpu.memory_space<smem>>
    %236 = vector.broadcast %235 : f32 to vector<16x32xf32>
    %237 = arith.mulf %236, %217 : vector<16x32xf32>
    %238 = arith.addf %234, %237 : vector<16x32xf32>
    %c54 = arith.constant 54 : index
    %239 = memref.load %arg13[%c54] : memref<64xf32, #tpu.memory_space<smem>>
    %240 = vector.broadcast %239 : f32 to vector<16x32xf32>
    %241 = arith.mulf %240, %216 : vector<16x32xf32>
    %c55 = arith.constant 55 : index
    %242 = memref.load %arg13[%c55] : memref<64xf32, #tpu.memory_space<smem>>
    %243 = vector.broadcast %242 : f32 to vector<16x32xf32>
    %244 = arith.mulf %243, %217 : vector<16x32xf32>
    %245 = arith.addf %241, %244 : vector<16x32xf32>
    %c56 = arith.constant 56 : index
    %246 = memref.load %arg13[%c56] : memref<64xf32, #tpu.memory_space<smem>>
    %247 = vector.broadcast %246 : f32 to vector<16x32xf32>
    %248 = arith.mulf %247, %216 : vector<16x32xf32>
    %c57 = arith.constant 57 : index
    %249 = memref.load %arg13[%c57] : memref<64xf32, #tpu.memory_space<smem>>
    %250 = vector.broadcast %249 : f32 to vector<16x32xf32>
    %251 = arith.mulf %250, %217 : vector<16x32xf32>
    %252 = arith.addf %248, %251 : vector<16x32xf32>
    %c58 = arith.constant 58 : index
    %253 = memref.load %arg13[%c58] : memref<64xf32, #tpu.memory_space<smem>>
    %254 = vector.broadcast %253 : f32 to vector<16x32xf32>
    %255 = arith.mulf %254, %216 : vector<16x32xf32>
    %c59 = arith.constant 59 : index
    %256 = memref.load %arg13[%c59] : memref<64xf32, #tpu.memory_space<smem>>
    %257 = vector.broadcast %256 : f32 to vector<16x32xf32>
    %258 = arith.mulf %257, %217 : vector<16x32xf32>
    %259 = arith.addf %255, %258 : vector<16x32xf32>
    %c60 = arith.constant 60 : index
    %260 = memref.load %arg13[%c60] : memref<64xf32, #tpu.memory_space<smem>>
    %261 = vector.broadcast %260 : f32 to vector<16x32xf32>
    %262 = arith.mulf %261, %216 : vector<16x32xf32>
    %c61 = arith.constant 61 : index
    %263 = memref.load %arg13[%c61] : memref<64xf32, #tpu.memory_space<smem>>
    %264 = vector.broadcast %263 : f32 to vector<16x32xf32>
    %265 = arith.mulf %264, %217 : vector<16x32xf32>
    %266 = arith.addf %262, %265 : vector<16x32xf32>
    %c62 = arith.constant 62 : index
    %267 = memref.load %arg13[%c62] : memref<64xf32, #tpu.memory_space<smem>>
    %268 = vector.broadcast %267 : f32 to vector<16x32xf32>
    %269 = arith.mulf %268, %216 : vector<16x32xf32>
    %c63 = arith.constant 63 : index
    %270 = memref.load %arg13[%c63] : memref<64xf32, #tpu.memory_space<smem>>
    %271 = vector.broadcast %270 : f32 to vector<16x32xf32>
    %272 = arith.mulf %271, %217 : vector<16x32xf32>
    %273 = arith.addf %269, %272 : vector<16x32xf32>
    %274 = tpu.concatenate %224, %231, %238, %245, %252, %259, %266, %273 in 0 : vector<16x32xf32>, vector<16x32xf32>, vector<16x32xf32>, vector<16x32xf32>, vector<16x32xf32>, vector<16x32xf32>, vector<16x32xf32>, vector<16x32xf32> -> vector<128x32xf32>
    %275 = arith.truncf %274 : vector<128x32xf32> to vector<128x32xbf16>
    %cst_24 = arith.constant dense<0.000000e+00> : vector<16x32xf32>
    %276 = tpu.matmul %0, %275, %cst_24 {dimension_numbers = #tpu.dot_dimension_numbers<[1], [0], [0], [1], [0, 0, 1, 1], [], []>} : vector<16x128xbf16>, vector<128x32xbf16>, vector<16x32xf32> -> vector<16x32xf32>
    %277 = arith.addf %276, %215 : vector<16x32xf32>
    %c0_25 = arith.constant 0 : index
    %c0_26 = arith.constant 0 : index
    %278 = vector.load %arg12[%c0_25, %c0_26] : memref<1x32xf32, #tpu.memory_space<vmem>>, vector<1x32xf32>
    %279 = vector.broadcast %278 : vector<1x32xf32> to vector<16x32xf32>
    %280 = arith.addf %277, %279 : vector<16x32xf32>
    %281 = math.tanh %280 : vector<16x32xf32>
    %282 = tpu.concatenate %71, %141, %211, %281 in 1 : vector<16x32xf32>, vector<16x32xf32>, vector<16x32xf32>, vector<16x32xf32> -> vector<16x128xf32>
    %283 = arith.truncf %282 : vector<16x128xf32> to vector<16x128xbf16>
    %c0_27 = arith.constant 0 : index
    %c0_28 = arith.constant 0 : index
    %284 = vector.load %arg14[%c0_27, %c0_28] : memref<128x2xbf16, #tpu.memory_space<vmem>>, vector<128x2xbf16>
    %cst_29 = arith.constant dense<0.000000e+00> : vector<16x2xf32>
    %285 = tpu.matmul %283, %284, %cst_29 {dimension_numbers = #tpu.dot_dimension_numbers<[1], [0], [0], [1], [0, 0, 1, 1], [], []>} : vector<16x128xbf16>, vector<128x2xbf16>, vector<16x2xf32> -> vector<16x2xf32>
    %286 = tpu.iota {dimensions = array<i32: 0>} : vector<16x1xi32>
    %287 = tpu.iota {dimensions = array<i32: 0>} : vector<2x1xi32>
    %c0_30 = arith.constant 0 : index
    %288 = memref.load %arg15[%c0_30] : memref<1xf32, #tpu.memory_space<smem>>
    %cst_31 = arith.constant 0.000000e+00 : f32
    %289 = vector.broadcast %cst_31 : f32 to vector<2x1xf32>
    %c0_32 = arith.constant 0 : index
    %290 = memref.load %arg1[%c0_32] : memref<2xi32, #tpu.memory_space<smem>>
    %c0_33 = arith.constant 0 : index
    %291 = memref.load %arg2[%c0_33] : memref<2xi32, #tpu.memory_space<smem>>
    %292 = vector.broadcast %290 : i32 to vector<16x1xi32>
    %293 = arith.cmpi eq, %286, %292 : vector<16x1xi32>
    %294 = vector.extract_strided_slice %285 {offsets = [0, 0], sizes = [16, 1], strides = [1, 1]} : vector<16x2xf32> to vector<16x1xf32>
    %cst_34 = arith.constant 0.000000e+00 : f32
    %295 = vector.broadcast %cst_34 : f32 to vector<16x1xf32>
    %296 = arith.select %293, %294, %295 : vector<16x1xi1>, vector<16x1xf32>
    %297 = vector.shape_cast %296 : vector<16x1xf32> to vector<1x16x1xf32>
    %cst_35 = arith.constant dense<0.000000e+00> : vector<1xf32>
    %298 = vector.multi_reduction <add>, %297, %cst_35 [1, 2] : vector<1x16x1xf32> to vector<1xf32>
    %299 = vector.shape_cast %298 : vector<1xf32> to vector<1x1x1xf32>
    %300 = vector.extract %299[0, 0, 0] : f32 from vector<1x1x1xf32>
    %301 = vector.broadcast %291 : i32 to vector<16x1xi32>
    %302 = arith.cmpi eq, %286, %301 : vector<16x1xi32>
    %303 = vector.extract_strided_slice %285 {offsets = [0, 1], sizes = [16, 1], strides = [1, 1]} : vector<16x2xf32> to vector<16x1xf32>
    %cst_36 = arith.constant 0.000000e+00 : f32
    %304 = vector.broadcast %cst_36 : f32 to vector<16x1xf32>
    %305 = arith.select %302, %303, %304 : vector<16x1xi1>, vector<16x1xf32>
    %306 = vector.shape_cast %305 : vector<16x1xf32> to vector<1x16x1xf32>
    %cst_37 = arith.constant dense<0.000000e+00> : vector<1xf32>
    %307 = vector.multi_reduction <add>, %306, %cst_37 [1, 2] : vector<1x16x1xf32> to vector<1xf32>
    %308 = vector.shape_cast %307 : vector<1xf32> to vector<1x1x1xf32>
    %309 = vector.extract %308[0, 0, 0] : f32 from vector<1x1x1xf32>
    %c0_i32 = arith.constant 0 : i32
    %310 = vector.broadcast %c0_i32 : i32 to vector<2x1xi32>
    %311 = arith.cmpi eq, %287, %310 : vector<2x1xi32>
    %312 = arith.addf %300, %309 : f32
    %313 = vector.broadcast %312 : f32 to vector<2x1xf32>
    %314 = arith.select %311, %313, %289 : vector<2x1xi1>, vector<2x1xf32>
    %c1_38 = arith.constant 1 : index
    %315 = memref.load %arg1[%c1_38] : memref<2xi32, #tpu.memory_space<smem>>
    %c1_39 = arith.constant 1 : index
    %316 = memref.load %arg2[%c1_39] : memref<2xi32, #tpu.memory_space<smem>>
    %317 = vector.broadcast %315 : i32 to vector<16x1xi32>
    %318 = arith.cmpi eq, %286, %317 : vector<16x1xi32>
    %319 = vector.extract_strided_slice %285 {offsets = [0, 0], sizes = [16, 1], strides = [1, 1]} : vector<16x2xf32> to vector<16x1xf32>
    %cst_40 = arith.constant 0.000000e+00 : f32
    %320 = vector.broadcast %cst_40 : f32 to vector<16x1xf32>
    %321 = arith.select %318, %319, %320 : vector<16x1xi1>, vector<16x1xf32>
    %322 = vector.shape_cast %321 : vector<16x1xf32> to vector<1x16x1xf32>
    %cst_41 = arith.constant dense<0.000000e+00> : vector<1xf32>
    %323 = vector.multi_reduction <add>, %322, %cst_41 [1, 2] : vector<1x16x1xf32> to vector<1xf32>
    %324 = vector.shape_cast %323 : vector<1xf32> to vector<1x1x1xf32>
    %325 = vector.extract %324[0, 0, 0] : f32 from vector<1x1x1xf32>
    %326 = vector.broadcast %316 : i32 to vector<16x1xi32>
    %327 = arith.cmpi eq, %286, %326 : vector<16x1xi32>
    %328 = vector.extract_strided_slice %285 {offsets = [0, 1], sizes = [16, 1], strides = [1, 1]} : vector<16x2xf32> to vector<16x1xf32>
    %cst_42 = arith.constant 0.000000e+00 : f32
    %329 = vector.broadcast %cst_42 : f32 to vector<16x1xf32>
    %330 = arith.select %327, %328, %329 : vector<16x1xi1>, vector<16x1xf32>
    %331 = vector.shape_cast %330 : vector<16x1xf32> to vector<1x16x1xf32>
    %cst_43 = arith.constant dense<0.000000e+00> : vector<1xf32>
    %332 = vector.multi_reduction <add>, %331, %cst_43 [1, 2] : vector<1x16x1xf32> to vector<1xf32>
    %333 = vector.shape_cast %332 : vector<1xf32> to vector<1x1x1xf32>
    %334 = vector.extract %333[0, 0, 0] : f32 from vector<1x1x1xf32>
    %c1_i32 = arith.constant 1 : i32
    %335 = vector.broadcast %c1_i32 : i32 to vector<2x1xi32>
    %336 = arith.cmpi eq, %287, %335 : vector<2x1xi32>
    %337 = arith.addf %325, %334 : f32
    %338 = vector.broadcast %337 : f32 to vector<2x1xf32>
    %339 = arith.select %336, %338, %314 : vector<2x1xi1>, vector<2x1xf32>
    %340 = vector.broadcast %288 : f32 to vector<2x1xf32>
    %341 = arith.addf %339, %340 : vector<2x1xf32>
    %342 = arith.negf %341 : vector<2x1xf32>
    %343 = math.exp %342 : vector<2x1xf32>
    %cst_44 = arith.constant 1.000000e+00 : f32
    %344 = vector.broadcast %cst_44 : f32 to vector<2x1xf32>
    %345 = arith.addf %344, %343 : vector<2x1xf32>
    %346 = arith.divf %344, %345 : vector<2x1xf32>
    %cst_45 = arith.constant 1.000000e+00 : f32
    %347 = vector.broadcast %cst_45 : f32 to vector<2x1xf32>
    %348 = arith.mulf %346, %347 : vector<2x1xf32>
    %c0_46 = arith.constant 0 : index
    %c0_47 = arith.constant 0 : index
    %349 = vector.load %arg16[%c0_46, %c0_47] : memref<2x1xf32, #tpu.memory_space<vmem>>, vector<2x1xf32>
    tpu.vector_store %arg16[%c0_46, %c0_47], %348 {strides = array<i32>} : memref<2x1xf32, #tpu.memory_space<vmem>>, vector<2x1xf32>,
    return
  }
  func.func @transform_0(%arg0: i32, %arg1: memref<2xi32, #tpu.memory_space<smem>>, %arg2: memref<2xi32, #tpu.memory_space<smem>>) -> (i32, i32) {
    %c0_i32 = arith.constant 0 : i32
    %c0_i32_0 = arith.constant 0 : i32
    %c0_i32_1 = arith.constant 0 : i32
    return %c0_i32, %c0_i32_0 : i32, i32
  }
  func.func @transform_1(%arg0: i32, %arg1: memref<2xi32, #tpu.memory_space<smem>>, %arg2: memref<2xi32, #tpu.memory_space<smem>>) -> (i32, i32) {
    %c0_i32 = arith.constant 0 : i32
    %c0_i32_0 = arith.constant 0 : i32
    %c0_i32_1 = arith.constant 0 : i32
    return %c0_i32, %c0_i32_0 : i32, i32
  }
  func.func @transform_2(%arg0: i32, %arg1: memref<2xi32, #tpu.memory_space<smem>>, %arg2: memref<2xi32, #tpu.memory_space<smem>>) -> (i32, i32) {
    %c0_i32 = arith.constant 0 : i32
    %c0_i32_0 = arith.constant 0 : i32
    %c0_i32_1 = arith.constant 0 : i32
    return %c0_i32, %c0_i32_0 : i32, i32
  }
  func.func @transform_3(%arg0: i32, %arg1: memref<2xi32, #tpu.memory_space<smem>>, %arg2: memref<2xi32, #tpu.memory_space<smem>>) -> (i32, i32) {
    %c0_i32 = arith.constant 0 : i32
    %c0_i32_0 = arith.constant 0 : i32
    %c0_i32_1 = arith.constant 0 : i32
    return %c0_i32, %c0_i32_0 : i32, i32
  }
  func.func @transform_4(%arg0: i32, %arg1: memref<2xi32, #tpu.memory_space<smem>>, %arg2: memref<2xi32, #tpu.memory_space<smem>>) -> (i32, i32) {
    %c0_i32 = arith.constant 0 : i32
    %c0_i32_0 = arith.constant 0 : i32
    %c0_i32_1 = arith.constant 0 : i32
    return %c0_i32, %c0_i32_0 : i32, i32
  }
  func.func @transform_5(%arg0: i32, %arg1: memref<2xi32, #tpu.memory_space<smem>>, %arg2: memref<2xi32, #tpu.memory_space<smem>>) -> (i32, i32) {
    %c0_i32 = arith.constant 0 : i32
    %c0_i32_0 = arith.constant 0 : i32
    %c0_i32_1 = arith.constant 0 : i32
    return %c0_i32, %c0_i32_0 : i32, i32
  }
  func.func @transform_6(%arg0: i32, %arg1: memref<2xi32, #tpu.memory_space<smem>>, %arg2: memref<2xi32, #tpu.memory_space<smem>>) -> (i32, i32) {
    %c0_i32 = arith.constant 0 : i32
    %c0_i32_0 = arith.constant 0 : i32
    %c0_i32_1 = arith.constant 0 : i32
    return %c0_i32, %c0_i32_0 : i32, i32
  }
  func.func @transform_7(%arg0: i32, %arg1: memref<2xi32, #tpu.memory_space<smem>>, %arg2: memref<2xi32, #tpu.memory_space<smem>>) -> (i32, i32) {
    %c0_i32 = arith.constant 0 : i32
    %c0_i32_0 = arith.constant 0 : i32
    %c0_i32_1 = arith.constant 0 : i32
    return %c0_i32, %c0_i32_0 : i32, i32
  }
  func.func @transform_8(%arg0: i32, %arg1: memref<2xi32, #tpu.memory_space<smem>>, %arg2: memref<2xi32, #tpu.memory_space<smem>>) -> (i32, i32) {
    %c0_i32 = arith.constant 0 : i32
    %c0_i32_0 = arith.constant 0 : i32
    %c0_i32_1 = arith.constant 0 : i32
    return %c0_i32, %c0_i32_0 : i32, i32
  }
  func.func @transform_9(%arg0: i32, %arg1: memref<2xi32, #tpu.memory_space<smem>>, %arg2: memref<2xi32, #tpu.memory_space<smem>>) -> (i32, i32) {
    %c0_i32 = arith.constant 0 : i32
    %c0_i32_0 = arith.constant 0 : i32
    %c0_i32_1 = arith.constant 0 : i32
    return %c0_i32, %c0_i32_0 : i32, i32
  }
  func.func @transform_10(%arg0: i32, %arg1: memref<2xi32, #tpu.memory_space<smem>>, %arg2: memref<2xi32, #tpu.memory_space<smem>>) -> i32 {
    %c0_i32 = arith.constant 0 : i32
    %c0_i32_0 = arith.constant 0 : i32
    return %c0_i32 : i32
  }
  func.func @transform_11(%arg0: i32, %arg1: memref<2xi32, #tpu.memory_space<smem>>, %arg2: memref<2xi32, #tpu.memory_space<smem>>) -> (i32, i32) {
    %c0_i32 = arith.constant 0 : i32
    %c0_i32_0 = arith.constant 0 : i32
    %c0_i32_1 = arith.constant 0 : i32
    return %c0_i32, %c0_i32_0 : i32, i32
  }
  func.func @transform_12(%arg0: i32, %arg1: memref<2xi32, #tpu.memory_space<smem>>, %arg2: memref<2xi32, #tpu.memory_space<smem>>) -> i32 {
    %c0_i32 = arith.constant 0 : i32
    %c0_i32_0 = arith.constant 0 : i32
    return %c0_i32 : i32
  }
  func.func @transform_13(%arg0: i32, %arg1: memref<2xi32, #tpu.memory_space<smem>>, %arg2: memref<2xi32, #tpu.memory_space<smem>>) -> (i32, i32) {
    %c0_i32 = arith.constant 0 : i32
    %c0_i32_0 = arith.constant 0 : i32
    %c0_i32_1 = arith.constant 0 : i32
    return %c0_i32, %c0_i32_0 : i32, i32
  }
}

</mosaic_0001>

<llo_original>
// kernel: tpu_custom_call.1
$region0: #{tpu_custom_call.1}
  #allocation0 [shape = 'u32[]', space=smem, size = 0x4, offset = 0x4, fixed_abs, tag = 'smem constant byte address 0x4 - core index']
  #allocation1 [shape = 'u32[144,128]{1,0:T(1,128)}', space=vmem, size = 0x12000, scoped, tag = 'internal scratch']
  #allocation2 [shape = 's32[1]{0}', space=sflag, size = 0x4, scoped, tag = 'scoped memory for tpu_custom_call.1']
  #allocation3 [shape = 'u8[512]{0}', space=smem, size = 0x200, scoped, tag = 'prefetched SMEM operand 0']
  #allocation4 [shape = 'u8[512]{0}', space=smem, size = 0x200, scoped, tag = 'prefetched SMEM operand 1']
  #allocation5 [shape = 'f32[1]{0:T(128)S(6)}', space=smem, size = 0x200, scoped, tag = 'scoped memory for tpu_custom_call.1']
  %s0 = inlined_call_operand.vmem [shape: s32[2], index: 0, kind: input, shape index: {}]
  %s1 = inlined_call_operand.vmem [shape: s32[2], index: 1, kind: input, shape index: {}]
  %s2 = inlined_call_operand.vmem [shape: f32[16,8], index: 2, kind: input, shape index: {}]
  %s3 = inlined_call_operand.vmem [shape: bf16[16,128], index: 3, kind: input, shape index: {}]
  %s4 = inlined_call_operand.vmem [shape: bf16[8,96], index: 4, kind: input, shape index: {}]
  %s5 = inlined_call_operand.vmem [shape: f32[1,32], index: 5, kind: input, shape index: {}]
  %s6 = inlined_call_operand.vmem [shape: bf16[32,96], index: 6, kind: input, shape index: {}]
  %s7 = inlined_call_operand.vmem [shape: f32[1,32], index: 7, kind: input, shape index: {}]
  %s8 = inlined_call_operand.vmem [shape: bf16[32,96], index: 8, kind: input, shape index: {}]
  %s9 = inlined_call_operand.vmem [shape: f32[1,32], index: 9, kind: input, shape index: {}]
  %s10 = inlined_call_operand.vmem [shape: bf16[32,96], index: 10, kind: input, shape index: {}]
  %s11 = inlined_call_operand.vmem [shape: f32[1,32], index: 11, kind: input, shape index: {}]
  %s12 = inlined_call_operand.vmem [shape: f32[64], index: 12, kind: input, shape index: {}]
  %s13 = inlined_call_operand.vmem [shape: bf16[128,2], index: 13, kind: input, shape index: {}]
  %s14 = inlined_call_operand.<no memory space> [shape: f32[1], index: 14, kind: input, shape index: {}]
  %s15 = inlined_call_operand.vmem [shape: f32[2,1], index: 15, kind: output, shape index: {}]
  %s16 = sld [smem:[#allocation0]]
  $region66: #{tpu_custom_call.1} parent=0
    _
  %s18 = ssub.s32 1, %s16
  %s19 = scalar_select 0, %s18, %s16
  %s20 = sshll.u32 %s0, 4
  %s21 = int_to_ptr.vmem [resolvable:$true] %s20
  %23 = dma.vmem_to_smem %s21, 16, [#allocation3], [#allocation2]
  %s24 = sshll.u32 %s1, 4
  %s25 = int_to_ptr.vmem [resolvable:$true] %s24
  %27 = dma.vmem_to_smem %s25, 16, [#allocation4], [#allocation2]
  %28 = sst [smem:[#allocation5]] %s14
  %29 = dma.done [#allocation2], 32
  %30 = sfence
  $region1: #{tpu_custom_call.1} parent=0
    #allocation6 [shape = 'u8[512]{0}', space=smem, size = 0x200, scoped, tag = 'input window, operand 12, single buffered']
    #allocation7 [shape = 's32[1]{0}', space=sflag, size = 0x4, scoped, tag = 'scoped memory for tpu_custom_call.1']
    %31 = vsyncpa [#allocation7], 0
    // Predicated region
    $region2: #{tpu_custom_call.1} parent=1 // pred_check
      _
    $region3: #{tpu_custom_call.1} parent=1 // pred_check_branch
      %33 = sbr.rel (0) target = $region5
    $region4: #{tpu_custom_call.1} parent=1 // pred_region
      _
    $region5: #{tpu_custom_call.1} parent=1 // pred_fallthru
      _
    // Predicated region
    $region6: #{tpu_custom_call.1} parent=1 // pred_check
      _
    $region7: #{tpu_custom_call.1} parent=1 // pred_check_branch
      %35 = sbr.rel (0) target = $region9
    $region8: #{tpu_custom_call.1} parent=1 // pred_region
      _
    $region9: #{tpu_custom_call.1} parent=1 // pred_fallthru
      _
    // Predicated region
    $region10: #{tpu_custom_call.1} parent=1 // pred_check
      _
    $region11: #{tpu_custom_call.1} parent=1 // pred_check_branch
      %37 = sbr.rel (0) target = $region13
    $region12: #{tpu_custom_call.1} parent=1 // pred_region
      _
    $region13: #{tpu_custom_call.1} parent=1 // pred_fallthru
      _
    // Predicated region
    $region14: #{tpu_custom_call.1} parent=1 // pred_check
      _
    $region15: #{tpu_custom_call.1} parent=1 // pred_check_branch
      %39 = sbr.rel (0) target = $region17
    $region16: #{tpu_custom_call.1} parent=1 // pred_region
      _
    $region17: #{tpu_custom_call.1} parent=1 // pred_fallthru
      _
    // Predicated region
    $region18: #{tpu_custom_call.1} parent=1 // pred_check
      _
    $region19: #{tpu_custom_call.1} parent=1 // pred_check_branch
      %41 = sbr.rel (0) target = $region21
    $region20: #{tpu_custom_call.1} parent=1 // pred_region
      _
    $region21: #{tpu_custom_call.1} parent=1 // pred_fallthru
      _
    // Predicated region
    $region22: #{tpu_custom_call.1} parent=1 // pred_check
      _
    $region23: #{tpu_custom_call.1} parent=1 // pred_check_branch
      %43 = sbr.rel (0) target = $region25
    $region24: #{tpu_custom_call.1} parent=1 // pred_region
      _
    $region25: #{tpu_custom_call.1} parent=1 // pred_fallthru
      _
    // Predicated region
    $region26: #{tpu_custom_call.1} parent=1 // pred_check
      _
    $region27: #{tpu_custom_call.1} parent=1 // pred_check_branch
      %45 = sbr.rel (0) target = $region29
    $region28: #{tpu_custom_call.1} parent=1 // pred_region
      _
    $region29: #{tpu_custom_call.1} parent=1 // pred_fallthru
      _
    // Predicated region
    $region30: #{tpu_custom_call.1} parent=1 // pred_check
      _
    $region31: #{tpu_custom_call.1} parent=1 // pred_check_branch
      %47 = sbr.rel (0) target = $region33
    $region32: #{tpu_custom_call.1} parent=1 // pred_region
      _
    $region33: #{tpu_custom_call.1} parent=1 // pred_fallthru
      _
    // Predicated region
    $region34: #{tpu_custom_call.1} parent=1 // pred_check
      _
    $region35: #{tpu_custom_call.1} parent=1 // pred_check_branch
      %49 = sbr.rel (0) target = $region37
    $region36: #{tpu_custom_call.1} parent=1 // pred_region
      _
    $region37: #{tpu_custom_call.1} parent=1 // pred_fallthru
      _
    // Predicated region
    $region38: #{tpu_custom_call.1} parent=1 // pred_check
      _
    $region39: #{tpu_custom_call.1} parent=1 // pred_check_branch
      %51 = sbr.rel (0) target = $region41
    $region40: #{tpu_custom_call.1} parent=1 // pred_region
      _
    $region41: #{tpu_custom_call.1} parent=1 // pred_fallthru
      _
    // Predicated region
    $region42: #{tpu_custom_call.1} parent=1 // pred_check
      _
    $region43: #{tpu_custom_call.1} parent=1 // pred_check_branch
      %53 = sbr.rel (0) target = $region45
    $region44: #{tpu_custom_call.1} parent=1 // pred_region
      %s55 = ssub.s32 16, 16
      %56 = vsyncadd [#allocation7], %s55
      %s58 = sshll.u32 %s12, 4
      %s59 = int_to_ptr.vmem [resolvable:$true] %s58
      %61 = dma.vmem_to_smem %s59, 16, [#allocation6], [#allocation7]
    $region45: #{tpu_custom_call.1} parent=1 // pred_fallthru
      _
    // Predicated region
    $region46: #{tpu_custom_call.1} parent=1 // pred_check
      _
    $region47: #{tpu_custom_call.1} parent=1 // pred_check_branch
      %63 = sbr.rel (0) target = $region49
    $region48: #{tpu_custom_call.1} parent=1 // pred_region
      _
    $region49: #{tpu_custom_call.1} parent=1 // pred_fallthru
      _
    // Predicated region
    $region50: #{tpu_custom_call.1} parent=1 // pred_check
      _
    $region51: #{tpu_custom_call.1} parent=1 // pred_check_branch
      %65 = sbr.rel (0) target = $region53
    $region52: #{tpu_custom_call.1} parent=1 // pred_region
      _
    $region53: #{tpu_custom_call.1} parent=1 // pred_fallthru
      _
    // Predicated region
    $region54: #{tpu_custom_call.1} parent=1 // pred_check
      _
    $region55: #{tpu_custom_call.1} parent=1 // pred_check_branch
      %67 = sbr.rel (0) target = $region57
    $region56: #{tpu_custom_call.1} parent=1 // pred_region
      %68 = dma.done [#allocation7], 16
    $region57: #{tpu_custom_call.1} parent=1 // pred_fallthru
      _
    %69 = sfence
    %v71 = vld [vmem:[%s3] sm:$0xf]
    %v72 = vld [vmem:[%s3 + $0x4] sm:$0xf]
    %v73 = vld [vmem:[%s2] sm:$0xff]
    %v74 = vld [vmem:[%s2 + $0x8] sm:$0xff]
    %v75 = vpack.c.bf16 %v74, %v73
    %v76 = vld [vmem:[%s4] sm:$0xf]
    %vm77 = vcmask 64512
    %v79 = vsel %vm77, %v75, 0
    %vm81 = vcmask 1043456
    %v83 = vsel %vm81, %v76, 0
    %85 = vmatprep.subr.bf16.mxu0 0
    %86 = vmatpush1.bf16.msra.mxu0 0
    %87 = vmatprep.subr.bf16.mxu0 0
    %88 = vmatpush1.bf16.msra.mxu0 0
    %89 = vmatprep.subr.bf16.mxu0 0
    %90 = vmatpush1.bf16.msra.mxu0 0
    %91 = vmatprep.subr.bf16.mxu0 0
    %92 = vmatpush1.bf16.msra.mxu0 0
    %93 = vmatprep.subr.bf16.mxu0 0
    %94 = vmatpush1.bf16.msra.mxu0 0
    %95 = vmatprep.subr.bf16.mxu0 0
    %96 = vmatpush1.bf16.msra.mxu0 0
    %97 = vmatprep.subr.bf16.mxu0 0
    %98 = vmatpush1.bf16.msra.mxu0 0
    %99 = vmatprep.subr.bf16.mxu0 0
    %100 = vmatpush1.bf16.msra.mxu0 %v83
    %101 = vmatprep.subr.bf16.mxu0 0
    %102 = vmatpush2.bf16.msra.mxu0 0
    %103 = vmatprep.subr.bf16.mxu0 0
    %104 = vmatpush2.bf16.msra.mxu0 0
    %105 = vmatprep.subr.bf16.mxu0 0
    %106 = vmatpush2.bf16.msra.mxu0 0
    %107 = vmatprep.subr.bf16.mxu0 0
    %108 = vmatpush2.bf16.msra.mxu0 0
    %109 = vmatprep.subr.bf16.mxu0 0
    %110 = vmatpush2.bf16.msra.mxu0 0
    %111 = vmatprep.subr.bf16.mxu0 0
    %112 = vmatpush2.bf16.msra.mxu0 0
    %113 = vmatprep.subr.bf16.mxu0 0
    %114 = vmatpush2.bf16.msra.mxu0 0
    %115 = vmatprep.subr.bf16.mxu0 0
    %116 = vmatpush2.bf16.msra.mxu0 0
    %117 = vmatprep.mubr.bf16.mxu0 0
    %118 = vmatmul.mubr.bf16.gmra.mxu0 %v79
    %v119 = vpop.f32.mrf.mxu0
    %v120 = vadd.f32 0.0, %v119
    %v121 = vpop.f32.mrf.mxu0
    %v122 = vpop.f32.mrf.mxu0
    %v123 = vadd.f32 0.0, %v122
    %v124 = vpop.f32.mrf.mxu0
    %125 = vdwg.mxu0
    %s126 = sld [smem:[#allocation6]]
    %v127 = vstv %s126
    %v128 = vmul.f32 %v127, %v120
    %v129 = vmul.f32 %v127, %v123
    %s130 = sld [smem:[#allocation6 + $0x1]]
    %v131 = vstv %s130
    %v132 = vmul.f32 %v131, %v120
    %v133 = vmul.f32 %v131, %v123
    %136 = vrot.lane.b32.xlu0 %v132, 96
    %v137 = vpop.permute.xlu0 %136
    %138 = vrot.lane.b32.xlu0 %v133, 96
    %v139 = vpop.permute.xlu0 %138
    %v142 = vadd.f32 %v128, %v137
    %v143 = vadd.f32 %v129, %v139
    %s144 = sld [smem:[#allocation6 + $0x2]]
    %v145 = vstv %s144
    %v146 = vmul.f32 %v145, %v120
    %v147 = vmul.f32 %v145, %v123
    %s148 = sld [smem:[#allocation6 + $0x3]]
    %v149 = vstv %s148
    %v150 = vmul.f32 %v149, %v120
    %v151 = vmul.f32 %v149, %v123
    %154 = vrot.lane.b32.xlu0 %v150, 96
    %v155 = vpop.permute.xlu0 %154
    %156 = vrot.lane.b32.xlu0 %v151, 96
    %v157 = vpop.permute.xlu0 %156
    %v160 = vadd.f32 %v146, %v155
    %v161 = vadd.f32 %v147, %v157
    %s162 = sld [smem:[#allocation6 + $0x4]]
    %v163 = vstv %s162
    %v164 = vmul.f32 %v163, %v120
    %v165 = vmul.f32 %v163, %v123
    %s166 = sld [smem:[#allocation6 + $0x5]]
    %v167 = vstv %s166
    %v168 = vmul.f32 %v167, %v120
    %v169 = vmul.f32 %v167, %v123
    %172 = vrot.lane.b32.xlu0 %v168, 96
    %v173 = vpop.permute.xlu0 %172
    %174 = vrot.lane.b32.xlu0 %v169, 96
    %v175 = vpop.permute.xlu0 %174
    %v178 = vadd.f32 %v164, %v173
    %v179 = vadd.f32 %v165, %v175
    %s180 = sld [smem:[#allocation6 + $0x6]]
    %v181 = vstv %s180
    %v182 = vmul.f32 %v181, %v120
    %v183 = vmul.f32 %v181, %v123
    %s184 = sld [smem:[#allocation6 + $0x7]]
    %v185 = vstv %s184
    %v186 = vmul.f32 %v185, %v120
    %v187 = vmul.f32 %v185, %v123
    %190 = vrot.lane.b32.xlu0 %v186, 96
    %v191 = vpop.permute.xlu0 %190
    %192 = vrot.lane.b32.xlu0 %v187, 96
    %v193 = vpop.permute.xlu0 %192
    %v196 = vadd.f32 %v182, %v191
    %v197 = vadd.f32 %v183, %v193
    %s198 = sld [smem:[#allocation6 + $0x8]]
    %v199 = vstv %s198
    %v200 = vmul.f32 %v199, %v120
    %v201 = vmul.f32 %v199, %v123
    %s202 = sld [smem:[#allocation6 + $0x9]]
    %v203 = vstv %s202
    %v204 = vmul.f32 %v203, %v120
    %v205 = vmul.f32 %v203, %v123
    %208 = vrot.lane.b32.xlu0 %v204, 96
    %v209 = vpop.permute.xlu0 %208
    %210 = vrot.lane.b32.xlu0 %v205, 96
    %v211 = vpop.permute.xlu0 %210
    %v214 = vadd.f32 %v200, %v209
    %v215 = vadd.f32 %v201, %v211
    %s216 = sld [smem:[#allocation6 + $0xa]]
    %v217 = vstv %s216
    %v218 = vmul.f32 %v217, %v120
    %v219 = vmul.f32 %v217, %v123
    %s220 = sld [smem:[#allocation6 + $0xb]]
    %v221 = vstv %s220
    %v222 = vmul.f32 %v221, %v120
    %v223 = vmul.f32 %v221, %v123
    %226 = vrot.lane.b32.xlu0 %v222, 96
    %v227 = vpop.permute.xlu0 %226
    %228 = vrot.lane.b32.xlu0 %v223, 96
    %v229 = vpop.permute.xlu0 %228
    %v232 = vadd.f32 %v218, %v227
    %v233 = vadd.f32 %v219, %v229
    %s234 = sld [smem:[#allocation6 + $0xc]]
    %v235 = vstv %s234
    %v236 = vmul.f32 %v235, %v120
    %v237 = vmul.f32 %v235, %v123
    %s238 = sld [smem:[#allocation6 + $0xd]]
    %v239 = vstv %s238
    %v240 = vmul.f32 %v239, %v120
    %v241 = vmul.f32 %v239, %v123
    %244 = vrot.lane.b32.xlu0 %v240, 96
    %v245 = vpop.permute.xlu0 %244
    %246 = vrot.lane.b32.xlu0 %v241, 96
    %v247 = vpop.permute.xlu0 %246
    %v250 = vadd.f32 %v236, %v245
    %v251 = vadd.f32 %v237, %v247
    %s252 = sld [smem:[#allocation6 + $0xe]]
    %v253 = vstv %s252
    %v254 = vmul.f32 %v253, %v120
    %v255 = vmul.f32 %v253, %v123
    %s256 = sld [smem:[#allocation6 + $0xf]]
    %v257 = vstv %s256
    %v258 = vmul.f32 %v257, %v120
    %v259 = vmul.f32 %v257, %v123
    %262 = vrot.lane.b32.xlu0 %v258, 96
    %v263 = vpop.permute.xlu0 %262
    %264 = vrot.lane.b32.xlu0 %v259, 96
    %v265 = vpop.permute.xlu0 %264
    %v268 = vadd.f32 %v254, %v263
    %v269 = vadd.f32 %v255, %v265
    %v270 = vpack.c.bf16 %v143, %v142
    %v271 = vpack.c.bf16 %v161, %v160
    %v272 = vpack.c.bf16 %v179, %v178
    %v273 = vpack.c.bf16 %v197, %v196
    %v274 = vpack.c.bf16 %v215, %v214
    %v275 = vpack.c.bf16 %v233, %v232
    %v276 = vpack.c.bf16 %v251, %v250
    %v277 = vpack.c.bf16 %v269, %v268
    %v280 = vunpack.c.l.b16 %v71
    %v281 = vunpack.c.l.b16 %v72
    %v282 = vpack.c.b16 %v281, %v280
    %292 = vrot.lane.b32.xlu0 %v270, 96
    %v293 = vpop.permute.xlu0 %292
    %294 = vrot.lane.b32.xlu0 %v271, 96
    %v295 = vpop.permute.xlu0 %294
    %296 = vrot.lane.b32.xlu0 %v272, 96
    %v297 = vpop.permute.xlu0 %296
    %298 = vrot.lane.b32.xlu0 %v273, 96
    %v299 = vpop.permute.xlu0 %298
    %300 = vrot.lane.b32.xlu0 %v274, 96
    %v301 = vpop.permute.xlu0 %300
    %302 = vrot.lane.b32.xlu0 %v275, 96
    %v303 = vpop.permute.xlu0 %302
    %304 = vrot.lane.b32.xlu0 %v276, 96
    %v305 = vpop.permute.xlu0 %304
    %306 = vrot.lane.b32.xlu0 %v277, 96
    %v307 = vpop.permute.xlu0 %306
    %316 = vmatprep.subr.bf16.mxu0 0
    %317 = vmatpush1.bf16.msra.mxu0 %v307
    %318 = vmatprep.subr.bf16.mxu0 0
    %319 = vmatpush1.bf16.msra.mxu0 %v305
    %320 = vmatprep.subr.bf16.mxu0 0
    %321 = vmatpush1.bf16.msra.mxu0 %v303
    %322 = vmatprep.subr.bf16.mxu0 0
    %323 = vmatpush1.bf16.msra.mxu0 %v301
    %324 = vmatprep.subr.bf16.mxu0 0
    %325 = vmatpush1.bf16.msra.mxu0 %v299
    %326 = vmatprep.subr.bf16.mxu0 0
    %327 = vmatpush1.bf16.msra.mxu0 %v297
    %328 = vmatprep.subr.bf16.mxu0 0
    %329 = vmatpush1.bf16.msra.mxu0 %v295
    %330 = vmatprep.subr.bf16.mxu0 0
    %331 = vmatpush1.bf16.msra.mxu0 %v293
    %332 = vmatprep.subr.bf16.mxu0 0
    %333 = vmatpush2.bf16.msra.mxu0 0
    %334 = vmatprep.subr.bf16.mxu0 0
    %335 = vmatpush2.bf16.msra.mxu0 0
    %336 = vmatprep.subr.bf16.mxu0 0
    %337 = vmatpush2.bf16.msra.mxu0 0
    %338 = vmatprep.subr.bf16.mxu0 0
    %339 = vmatpush2.bf16.msra.mxu0 0
    %340 = vmatprep.subr.bf16.mxu0 0
    %341 = vmatpush2.bf16.msra.mxu0 0
    %342 = vmatprep.subr.bf16.mxu0 0
    %343 = vmatpush2.bf16.msra.mxu0 0
    %344 = vmatprep.subr.bf16.mxu0 0
    %345 = vmatpush2.bf16.msra.mxu0 0
    %346 = vmatprep.subr.bf16.mxu0 0
    %347 = vmatpush2.bf16.msra.mxu0 0
    %348 = vmatprep.mubr.bf16.mxu0 0
    %349 = vmatmul.mubr.bf16.gmra.mxu0 %v282
    %v350 = vpop.f32.mrf.mxu0
    %v351 = vadd.f32 %v120, %v350
    %v352 = vpop.f32.mrf.mxu0
    %v353 = vpop.f32.mrf.mxu0
    %v354 = vadd.f32 %v123, %v353
    %v355 = vpop.f32.mrf.mxu0
    %356 = vdwg.mxu0
    %v357 = vld [vmem:[%s5] sm:$0x1]
    %v359 = vlaneseq
    %v360 = vshrl.u32 %v359, 7
    %v361 = vsub.s32 0, %v360
    %v362 = vrot.slane %v357, %v361
    %v364 = vadd.f32 %v351, %v362
    %v365 = vadd.f32 %v354, %v362
    %v366 = vtanh.pop %v364
    %v367 = vtanh.pop %v365
    %v368 = vpack.c.bf16 %v367, %v366
    %v369 = vld [vmem:[%s6] sm:$0xf]
    %v370 = vld [vmem:[%s6 + $0x4] sm:$0xf]
    %v371 = vld [vmem:[%s6 + $0x8] sm:$0xf]
    %v372 = vld [vmem:[%s6 + $0xc] sm:$0xf]
    %v377 = vunpack.c.l.b16 %v369
    %v378 = vunpack.c.l.b16 %v370
    %v379 = vunpack.c.l.b16 %v371
    %v380 = vunpack.c.l.b16 %v372
    %v381 = vpack.c.b16 %v378, %v377
    %v382 = vpack.c.b16 %v380, %v379
    %vm385 = vcmask 261120
    %v387 = vsel %vm385, %v368, 0
    %389 = vmatprep.subr.bf16.mxu0 0
    %390 = vmatpush1.bf16.msra.mxu0 0
    %391 = vmatprep.subr.bf16.mxu0 0
    %392 = vmatpush1.bf16.msra.mxu0 0
    %393 = vmatprep.subr.bf16.mxu0 0
    %394 = vmatpush1.bf16.msra.mxu0 0
    %395 = vmatprep.subr.bf16.mxu0 0
    %396 = vmatpush1.bf16.msra.mxu0 0
    %397 = vmatprep.subr.bf16.mxu0 0
    %398 = vmatpush1.bf16.msra.mxu0 0
    %399 = vmatprep.subr.bf16.mxu0 0
    %400 = vmatpush1.bf16.msra.mxu0 0
    %401 = vmatprep.subr.bf16.mxu0 0
    %402 = vmatpush1.bf16.msra.mxu0 %v382
    %403 = vmatprep.subr.bf16.mxu0 0
    %404 = vmatpush1.bf16.msra.mxu0 %v381
    %405 = vmatprep.subr.bf16.mxu0 0
    %406 = vmatpush2.bf16.msra.mxu0 0
    %407 = vmatprep.subr.bf16.mxu0 0
    %408 = vmatpush2.bf16.msra.mxu0 0
    %409 = vmatprep.subr.bf16.mxu0 0
    %410 = vmatpush2.bf16.msra.mxu0 0
    %411 = vmatprep.subr.bf16.mxu0 0
    %412 = vmatpush2.bf16.msra.mxu0 0
    %413 = vmatprep.subr.bf16.mxu0 0
    %414 = vmatpush2.bf16.msra.mxu0 0
    %415 = vmatprep.subr.bf16.mxu0 0
    %416 = vmatpush2.bf16.msra.mxu0 0
    %417 = vmatprep.subr.bf16.mxu0 0
    %418 = vmatpush2.bf16.msra.mxu0 0
    %419 = vmatprep.subr.bf16.mxu0 0
    %420 = vmatpush2.bf16.msra.mxu0 0
    %421 = vmatprep.mubr.bf16.mxu0 0
    %422 = vmatmul.mubr.bf16.gmra.mxu0 %v387
    %v423 = vpop.f32.mrf.mxu0
    %v424 = vadd.f32 0.0, %v423
    %v425 = vpop.f32.mrf.mxu0
    %v426 = vpop.f32.mrf.mxu0
    %v427 = vadd.f32 0.0, %v426
    %v428 = vpop.f32.mrf.mxu0
    %429 = vdwg.mxu0
    %s430 = sld [smem:[#allocation6 + $0x10]]
    %v431 = vstv %s430
    %v432 = vmul.f32 %v431, %v424
    %v433 = vmul.f32 %v431, %v427
    %s434 = sld [smem:[#allocation6 + $0x11]]
    %v435 = vstv %s434
    %v436 = vmul.f32 %v435, %v424
    %v437 = vmul.f32 %v435, %v427
    %440 = vrot.lane.b32.xlu0 %v436, 96
    %v441 = vpop.permute.xlu0 %440
    %442 = vrot.lane.b32.xlu0 %v437, 96
    %v443 = vpop.permute.xlu0 %442
    %v446 = vadd.f32 %v432, %v441
    %v447 = vadd.f32 %v433, %v443
    %s448 = sld [smem:[#allocation6 + $0x12]]
    %v449 = vstv %s448
    %v450 = vmul.f32 %v449, %v424
    %v451 = vmul.f32 %v449, %v427
    %s452 = sld [smem:[#allocation6 + $0x13]]
    %v453 = vstv %s452
    %v454 = vmul.f32 %v453, %v424
    %v455 = vmul.f32 %v453, %v427
    %458 = vrot.lane.b32.xlu0 %v454, 96
    %v459 = vpop.permute.xlu0 %458
    %460 = vrot.lane.b32.xlu0 %v455, 96
    %v461 = vpop.permute.xlu0 %460
    %v464 = vadd.f32 %v450, %v459
    %v465 = vadd.f32 %v451, %v461
    %s466 = sld [smem:[#allocation6 + $0x14]]
    %v467 = vstv %s466
    %v468 = vmul.f32 %v467, %v424
    %v469 = vmul.f32 %v467, %v427
    %s470 = sld [smem:[#allocation6 + $0x15]]
    %v471 = vstv %s470
    %v472 = vmul.f32 %v471, %v424
    %v473 = vmul.f32 %v471, %v427
    %476 = vrot.lane.b32.xlu0 %v472, 96
    %v477 = vpop.permute.xlu0 %476
    %478 = vrot.lane.b32.xlu0 %v473, 96
    %v479 = vpop.permute.xlu0 %478
    %v482 = vadd.f32 %v468, %v477
    %v483 = vadd.f32 %v469, %v479
    %s484 = sld [smem:[#allocation6 + $0x16]]
    %v485 = vstv %s484
    %v486 = vmul.f32 %v485, %v424
    %v487 = vmul.f32 %v485, %v427
    %s488 = sld [smem:[#allocation6 + $0x17]]
    %v489 = vstv %s488
    %v490 = vmul.f32 %v489, %v424
    %v491 = vmul.f32 %v489, %v427
    %494 = vrot.lane.b32.xlu0 %v490, 96
    %v495 = vpop.permute.xlu0 %494
    %496 = vrot.lane.b32.xlu0 %v491, 96
    %v497 = vpop.permute.xlu0 %496
    %v500 = vadd.f32 %v486, %v495
    %v501 = vadd.f32 %v487, %v497
    %s502 = sld [smem:[#allocation6 + $0x18]]
    %v503 = vstv %s502
    %v504 = vmul.f32 %v503, %v424
    %v505 = vmul.f32 %v503, %v427
    %s506 = sld [smem:[#allocation6 + $0x19]]
    %v507 = vstv %s506
    %v508 = vmul.f32 %v507, %v424
    %v509 = vmul.f32 %v507, %v427
    %512 = vrot.lane.b32.xlu0 %v508, 96
    %v513 = vpop.permute.xlu0 %512
    %514 = vrot.lane.b32.xlu0 %v509, 96
    %v515 = vpop.permute.xlu0 %514
    %v518 = vadd.f32 %v504, %v513
    %v519 = vadd.f32 %v505, %v515
    %s520 = sld [smem:[#allocation6 + $0x1a]]
    %v521 = vstv %s520
    %v522 = vmul.f32 %v521, %v424
    %v523 = vmul.f32 %v521, %v427
    %s524 = sld [smem:[#allocation6 + $0x1b]]
    %v525 = vstv %s524
    %v526 = vmul.f32 %v525, %v424
    %v527 = vmul.f32 %v525, %v427
    %530 = vrot.lane.b32.xlu0 %v526, 96
    %v531 = vpop.permute.xlu0 %530
    %532 = vrot.lane.b32.xlu0 %v527, 96
    %v533 = vpop.permute.xlu0 %532
    %v536 = vadd.f32 %v522, %v531
    %v537 = vadd.f32 %v523, %v533
    %s538 = sld [smem:[#allocation6 + $0x1c]]
    %v539 = vstv %s538
    %v540 = vmul.f32 %v539, %v424
    %v541 = vmul.f32 %v539, %v427
    %s542 = sld [smem:[#allocation6 + $0x1d]]
    %v543 = vstv %s542
    %v544 = vmul.f32 %v543, %v424
    %v545 = vmul.f32 %v543, %v427
    %548 = vrot.lane.b32.xlu0 %v544, 96
    %v549 = vpop.permute.xlu0 %548
    %550 = vrot.lane.b32.xlu0 %v545, 96
    %v551 = vpop.permute.xlu0 %550
    %v554 = vadd.f32 %v540, %v549
    %v555 = vadd.f32 %v541, %v551
    %s556 = sld [smem:[#allocation6 + $0x1e]]
    %v557 = vstv %s556
    %v558 = vmul.f32 %v557, %v424
    %v559 = vmul.f32 %v557, %v427
    %s560 = sld [smem:[#allocation6 + $0x1f]]
    %v561 = vstv %s560
    %v562 = vmul.f32 %v561, %v424
    %v563 = vmul.f32 %v561, %v427
    %566 = vrot.lane.b32.xlu0 %v562, 96
    %v567 = vpop.permute.xlu0 %566
    %568 = vrot.lane.b32.xlu0 %v563, 96
    %v569 = vpop.permute.xlu0 %568
    %v572 = vadd.f32 %v558, %v567
    %v573 = vadd.f32 %v559, %v569
    %v574 = vpack.c.bf16 %v447, %v446
    %v575 = vpack.c.bf16 %v465, %v464
    %v576 = vpack.c.bf16 %v483, %v482
    %v577 = vpack.c.bf16 %v501, %v500
    %v578 = vpack.c.bf16 %v519, %v518
    %v579 = vpack.c.bf16 %v537, %v536
    %v580 = vpack.c.bf16 %v555, %v554
    %v581 = vpack.c.bf16 %v573, %v572
    %590 = vrot.lane.b32.xlu0 %v574, 96
    %v591 = vpop.permute.xlu0 %590
    %592 = vrot.lane.b32.xlu0 %v575, 96
    %v593 = vpop.permute.xlu0 %592
    %594 = vrot.lane.b32.xlu0 %v576, 96
    %v595 = vpop.permute.xlu0 %594
    %596 = vrot.lane.b32.xlu0 %v577, 96
    %v597 = vpop.permute.xlu0 %596
    %598 = vrot.lane.b32.xlu0 %v578, 96
    %v599 = vpop.permute.xlu0 %598
    %600 = vrot.lane.b32.xlu0 %v579, 96
    %v601 = vpop.permute.xlu0 %600
    %602 = vrot.lane.b32.xlu0 %v580, 96
    %v603 = vpop.permute.xlu0 %602
    %604 = vrot.lane.b32.xlu0 %v581, 96
    %v605 = vpop.permute.xlu0 %604
    %614 = vmatprep.subr.bf16.mxu0 0
    %615 = vmatpush1.bf16.msra.mxu0 %v605
    %616 = vmatprep.subr.bf16.mxu0 0
    %617 = vmatpush1.bf16.msra.mxu0 %v603
    %618 = vmatprep.subr.bf16.mxu0 0
    %619 = vmatpush1.bf16.msra.mxu0 %v601
    %620 = vmatprep.subr.bf16.mxu0 0
    %621 = vmatpush1.bf16.msra.mxu0 %v599
    %622 = vmatprep.subr.bf16.mxu0 0
    %623 = vmatpush1.bf16.msra.mxu0 %v597
    %624 = vmatprep.subr.bf16.mxu0 0
    %625 = vmatpush1.bf16.msra.mxu0 %v595
    %626 = vmatprep.subr.bf16.mxu0 0
    %627 = vmatpush1.bf16.msra.mxu0 %v593
    %628 = vmatprep.subr.bf16.mxu0 0
    %629 = vmatpush1.bf16.msra.mxu0 %v591
    %630 = vmatprep.subr.bf16.mxu0 0
    %631 = vmatpush2.bf16.msra.mxu0 0
    %632 = vmatprep.subr.bf16.mxu0 0
    %633 = vmatpush2.bf16.msra.mxu0 0
    %634 = vmatprep.subr.bf16.mxu0 0
    %635 = vmatpush2.bf16.msra.mxu0 0
    %636 = vmatprep.subr.bf16.mxu0 0
    %637 = vmatpush2.bf16.msra.mxu0 0
    %638 = vmatprep.subr.bf16.mxu0 0
    %639 = vmatpush2.bf16.msra.mxu0 0
    %640 = vmatprep.subr.bf16.mxu0 0
    %641 = vmatpush2.bf16.msra.mxu0 0
    %642 = vmatprep.subr.bf16.mxu0 0
    %643 = vmatpush2.bf16.msra.mxu0 0
    %644 = vmatprep.subr.bf16.mxu0 0
    %645 = vmatpush2.bf16.msra.mxu0 0
    %646 = vmatprep.mubr.bf16.mxu0 0
    %647 = vmatmul.mubr.bf16.gmra.mxu0 %v282
    %v648 = vpop.f32.mrf.mxu0
    %v649 = vadd.f32 %v424, %v648
    %v650 = vpop.f32.mrf.mxu0
    %v651 = vpop.f32.mrf.mxu0
    %v652 = vadd.f32 %v427, %v651
    %v653 = vpop.f32.mrf.mxu0
    %654 = vdwg.mxu0
    %v655 = vld [vmem:[%s7] sm:$0x1]
    %v657 = vlaneseq
    %v658 = vshrl.u32 %v657, 7
    %v659 = vsub.s32 0, %v658
    %v660 = vrot.slane %v655, %v659
    %v662 = vadd.f32 %v649, %v660
    %v663 = vadd.f32 %v652, %v660
    %v664 = vtanh.pop %v662
    %v665 = vtanh.pop %v663
    %v666 = vpack.c.bf16 %v665, %v664
    %v667 = vld [vmem:[%s8] sm:$0xf]
    %v668 = vld [vmem:[%s8 + $0x4] sm:$0xf]
    %v669 = vld [vmem:[%s8 + $0x8] sm:$0xf]
    %v670 = vld [vmem:[%s8 + $0xc] sm:$0xf]
    %v675 = vunpack.c.l.b16 %v667
    %v676 = vunpack.c.l.b16 %v668
    %v677 = vunpack.c.l.b16 %v669
    %v678 = vunpack.c.l.b16 %v670
    %v679 = vpack.c.b16 %v676, %v675
    %v680 = vpack.c.b16 %v678, %v677
    %v684 = vsel %vm385, %v666, 0
    %686 = vmatprep.subr.bf16.mxu0 0
    %687 = vmatpush1.bf16.msra.mxu0 0
    %688 = vmatprep.subr.bf16.mxu0 0
    %689 = vmatpush1.bf16.msra.mxu0 0
    %690 = vmatprep.subr.bf16.mxu0 0
    %691 = vmatpush1.bf16.msra.mxu0 0
    %692 = vmatprep.subr.bf16.mxu0 0
    %693 = vmatpush1.bf16.msra.mxu0 0
    %694 = vmatprep.subr.bf16.mxu0 0
    %695 = vmatpush1.bf16.msra.mxu0 0
    %696 = vmatprep.subr.bf16.mxu0 0
    %697 = vmatpush1.bf16.msra.mxu0 0
    %698 = vmatprep.subr.bf16.mxu0 0
    %699 = vmatpush1.bf16.msra.mxu0 %v680
    %700 = vmatprep.subr.bf16.mxu0 0
    %701 = vmatpush1.bf16.msra.mxu0 %v679
    %702 = vmatprep.subr.bf16.mxu0 0
    %703 = vmatpush2.bf16.msra.mxu0 0
    %704 = vmatprep.subr.bf16.mxu0 0
    %705 = vmatpush2.bf16.msra.mxu0 0
    %706 = vmatprep.subr.bf16.mxu0 0
    %707 = vmatpush2.bf16.msra.mxu0 0
    %708 = vmatprep.subr.bf16.mxu0 0
    %709 = vmatpush2.bf16.msra.mxu0 0
    %710 = vmatprep.subr.bf16.mxu0 0
    %711 = vmatpush2.bf16.msra.mxu0 0
    %712 = vmatprep.subr.bf16.mxu0 0
    %713 = vmatpush2.bf16.msra.mxu0 0
    %714 = vmatprep.subr.bf16.mxu0 0
    %715 = vmatpush2.bf16.msra.mxu0 0
    %716 = vmatprep.subr.bf16.mxu0 0
    %717 = vmatpush2.bf16.msra.mxu0 0
    %718 = vmatprep.mubr.bf16.mxu0 0
    %719 = vmatmul.mubr.bf16.gmra.mxu0 %v684
    %v720 = vpop.f32.mrf.mxu0
    %v721 = vadd.f32 0.0, %v720
    %v722 = vpop.f32.mrf.mxu0
    %v723 = vpop.f32.mrf.mxu0
    %v724 = vadd.f32 0.0, %v723
    %v725 = vpop.f32.mrf.mxu0
    %726 = vdwg.mxu0
    %s727 = sld [smem:[#allocation6 + $0x20]]
    %v728 = vstv %s727
    %v729 = vmul.f32 %v728, %v721
    %v730 = vmul.f32 %v728, %v724
    %s731 = sld [smem:[#allocation6 + $0x21]]
    %v732 = vstv %s731
    %v733 = vmul.f32 %v732, %v721
    %v734 = vmul.f32 %v732, %v724
    %737 = vrot.lane.b32.xlu0 %v733, 96
    %v738 = vpop.permute.xlu0 %737
    %739 = vrot.lane.b32.xlu0 %v734, 96
    %v740 = vpop.permute.xlu0 %739
    %v743 = vadd.f32 %v729, %v738
    %v744 = vadd.f32 %v730, %v740
    %s745 = sld [smem:[#allocation6 + $0x22]]
    %v746 = vstv %s745
    %v747 = vmul.f32 %v746, %v721
    %v748 = vmul.f32 %v746, %v724
    %s749 = sld [smem:[#allocation6 + $0x23]]
    %v750 = vstv %s749
    %v751 = vmul.f32 %v750, %v721
    %v752 = vmul.f32 %v750, %v724
    %755 = vrot.lane.b32.xlu0 %v751, 96
    %v756 = vpop.permute.xlu0 %755
    %757 = vrot.lane.b32.xlu0 %v752, 96
    %v758 = vpop.permute.xlu0 %757
    %v761 = vadd.f32 %v747, %v756
    %v762 = vadd.f32 %v748, %v758
    %s763 = sld [smem:[#allocation6 + $0x24]]
    %v764 = vstv %s763
    %v765 = vmul.f32 %v764, %v721
    %v766 = vmul.f32 %v764, %v724
    %s767 = sld [smem:[#allocation6 + $0x25]]
    %v768 = vstv %s767
    %v769 = vmul.f32 %v768, %v721
    %v770 = vmul.f32 %v768, %v724
    %773 = vrot.lane.b32.xlu0 %v769, 96
    %v774 = vpop.permute.xlu0 %773
    %775 = vrot.lane.b32.xlu0 %v770, 96
    %v776 = vpop.permute.xlu0 %775
    %v779 = vadd.f32 %v765, %v774
    %v780 = vadd.f32 %v766, %v776
    %s781 = sld [smem:[#allocation6 + $0x26]]
    %v782 = vstv %s781
    %v783 = vmul.f32 %v782, %v721
    %v784 = vmul.f32 %v782, %v724
    %s785 = sld [smem:[#allocation6 + $0x27]]
    %v786 = vstv %s785
    %v787 = vmul.f32 %v786, %v721
    %v788 = vmul.f32 %v786, %v724
    %791 = vrot.lane.b32.xlu0 %v787, 96
    %v792 = vpop.permute.xlu0 %791
    %793 = vrot.lane.b32.xlu0 %v788, 96
    %v794 = vpop.permute.xlu0 %793
    %v797 = vadd.f32 %v783, %v792
    %v798 = vadd.f32 %v784, %v794
    %s799 = sld [smem:[#allocation6 + $0x28]]
    %v800 = vstv %s799
    %v801 = vmul.f32 %v800, %v721
    %v802 = vmul.f32 %v800, %v724
    %s803 = sld [smem:[#allocation6 + $0x29]]
    %v804 = vstv %s803
    %v805 = vmul.f32 %v804, %v721
    %v806 = vmul.f32 %v804, %v724
    %809 = vrot.lane.b32.xlu0 %v805, 96
    %v810 = vpop.permute.xlu0 %809
    %811 = vrot.lane.b32.xlu0 %v806, 96
    %v812 = vpop.permute.xlu0 %811
    %v815 = vadd.f32 %v801, %v810
    %v816 = vadd.f32 %v802, %v812
    %s817 = sld [smem:[#allocation6 + $0x2a]]
    %v818 = vstv %s817
    %v819 = vmul.f32 %v818, %v721
    %v820 = vmul.f32 %v818, %v724
    %s821 = sld [smem:[#allocation6 + $0x2b]]
    %v822 = vstv %s821
    %v823 = vmul.f32 %v822, %v721
    %v824 = vmul.f32 %v822, %v724
    %827 = vrot.lane.b32.xlu0 %v823, 96
    %v828 = vpop.permute.xlu0 %827
    %829 = vrot.lane.b32.xlu0 %v824, 96
    %v830 = vpop.permute.xlu0 %829
    %v833 = vadd.f32 %v819, %v828
    %v834 = vadd.f32 %v820, %v830
    %s835 = sld [smem:[#allocation6 + $0x2c]]
    %v836 = vstv %s835
    %v837 = vmul.f32 %v836, %v721
    %v838 = vmul.f32 %v836, %v724
    %s839 = sld [smem:[#allocation6 + $0x2d]]
    %v840 = vstv %s839
    %v841 = vmul.f32 %v840, %v721
    %v842 = vmul.f32 %v840, %v724
    %845 = vrot.lane.b32.xlu0 %v841, 96
    %v846 = vpop.permute.xlu0 %845
    %847 = vrot.lane.b32.xlu0 %v842, 96
    %v848 = vpop.permute.xlu0 %847
    %v851 = vadd.f32 %v837, %v846
    %v852 = vadd.f32 %v838, %v848
    %s853 = sld [smem:[#allocation6 + $0x2e]]
    %v854 = vstv %s853
    %v855 = vmul.f32 %v854, %v721
    %v856 = vmul.f32 %v854, %v724
    %s857 = sld [smem:[#allocation6 + $0x2f]]
    %v858 = vstv %s857
    %v859 = vmul.f32 %v858, %v721
    %v860 = vmul.f32 %v858, %v724
    %863 = vrot.lane.b32.xlu0 %v859, 96
    %v864 = vpop.permute.xlu0 %863
    %865 = vrot.lane.b32.xlu0 %v860, 96
    %v866 = vpop.permute.xlu0 %865
    %v869 = vadd.f32 %v855, %v864
    %v870 = vadd.f32 %v856, %v866
    %v871 = vpack.c.bf16 %v744, %v743
    %v872 = vpack.c.bf16 %v762, %v761
    %v873 = vpack.c.bf16 %v780, %v779
    %v874 = vpack.c.bf16 %v798, %v797
    %v875 = vpack.c.bf16 %v816, %v815
    %v876 = vpack.c.bf16 %v834, %v833
    %v877 = vpack.c.bf16 %v852, %v851
    %v878 = vpack.c.bf16 %v870, %v869
    %887 = vrot.lane.b32.xlu0 %v871, 96
    %v888 = vpop.permute.xlu0 %887
    %889 = vrot.lane.b32.xlu0 %v872, 96
    %v890 = vpop.permute.xlu0 %889
    %891 = vrot.lane.b32.xlu0 %v873, 96
    %v892 = vpop.permute.xlu0 %891
    %893 = vrot.lane.b32.xlu0 %v874, 96
    %v894 = vpop.permute.xlu0 %893
    %895 = vrot.lane.b32.xlu0 %v875, 96
    %v896 = vpop.permute.xlu0 %895
    %897 = vrot.lane.b32.xlu0 %v876, 96
    %v898 = vpop.permute.xlu0 %897
    %899 = vrot.lane.b32.xlu0 %v877, 96
    %v900 = vpop.permute.xlu0 %899
    %901 = vrot.lane.b32.xlu0 %v878, 96
    %v902 = vpop.permute.xlu0 %901
    %911 = vmatprep.subr.bf16.mxu0 0
    %912 = vmatpush1.bf16.msra.mxu0 %v902
    %913 = vmatprep.subr.bf16.mxu0 0
    %914 = vmatpush1.bf16.msra.mxu0 %v900
    %915 = vmatprep.subr.bf16.mxu0 0
    %916 = vmatpush1.bf16.msra.mxu0 %v898
    %917 = vmatprep.subr.bf16.mxu0 0
    %918 = vmatpush1.bf16.msra.mxu0 %v896
    %919 = vmatprep.subr.bf16.mxu0 0
    %920 = vmatpush1.bf16.msra.mxu0 %v894
    %921 = vmatprep.subr.bf16.mxu0 0
    %922 = vmatpush1.bf16.msra.mxu0 %v892
    %923 = vmatprep.subr.bf16.mxu0 0
    %924 = vmatpush1.bf16.msra.mxu0 %v890
    %925 = vmatprep.subr.bf16.mxu0 0
    %926 = vmatpush1.bf16.msra.mxu0 %v888
    %927 = vmatprep.subr.bf16.mxu0 0
    %928 = vmatpush2.bf16.msra.mxu0 0
    %929 = vmatprep.subr.bf16.mxu0 0
    %930 = vmatpush2.bf16.msra.mxu0 0
    %931 = vmatprep.subr.bf16.mxu0 0
    %932 = vmatpush2.bf16.msra.mxu0 0
    %933 = vmatprep.subr.bf16.mxu0 0
    %934 = vmatpush2.bf16.msra.mxu0 0
    %935 = vmatprep.subr.bf16.mxu0 0
    %936 = vmatpush2.bf16.msra.mxu0 0
    %937 = vmatprep.subr.bf16.mxu0 0
    %938 = vmatpush2.bf16.msra.mxu0 0
    %939 = vmatprep.subr.bf16.mxu0 0
    %940 = vmatpush2.bf16.msra.mxu0 0
    %941 = vmatprep.subr.bf16.mxu0 0
    %942 = vmatpush2.bf16.msra.mxu0 0
    %943 = vmatprep.mubr.bf16.mxu0 0
    %944 = vmatmul.mubr.bf16.gmra.mxu0 %v282
    %v945 = vpop.f32.mrf.mxu0
    %v946 = vadd.f32 %v721, %v945
    %v947 = vpop.f32.mrf.mxu0
    %v948 = vpop.f32.mrf.mxu0
    %v949 = vadd.f32 %v724, %v948
    %v950 = vpop.f32.mrf.mxu0
    %951 = vdwg.mxu0
    %v952 = vld [vmem:[%s9] sm:$0x1]
    %v954 = vlaneseq
    %v955 = vshrl.u32 %v954, 7
    %v956 = vsub.s32 0, %v955
    %v957 = vrot.slane %v952, %v956
    %v959 = vadd.f32 %v946, %v957
    %v960 = vadd.f32 %v949, %v957
    %v961 = vtanh.pop %v959
    %v962 = vtanh.pop %v960
    %v963 = vpack.c.bf16 %v962, %v961
    %v964 = vld [vmem:[%s10] sm:$0xf]
    %v965 = vld [vmem:[%s10 + $0x4] sm:$0xf]
    %v966 = vld [vmem:[%s10 + $0x8] sm:$0xf]
    %v967 = vld [vmem:[%s10 + $0xc] sm:$0xf]
    %v972 = vunpack.c.l.b16 %v964
    %v973 = vunpack.c.l.b16 %v965
    %v974 = vunpack.c.l.b16 %v966
    %v975 = vunpack.c.l.b16 %v967
    %v976 = vpack.c.b16 %v973, %v972
    %v977 = vpack.c.b16 %v975, %v974
    %v981 = vsel %vm385, %v963, 0
    %983 = vmatprep.subr.bf16.mxu0 0
    %984 = vmatpush1.bf16.msra.mxu0 0
    %985 = vmatprep.subr.bf16.mxu0 0
    %986 = vmatpush1.bf16.msra.mxu0 0
    %987 = vmatprep.subr.bf16.mxu0 0
    %988 = vmatpush1.bf16.msra.mxu0 0
    %989 = vmatprep.subr.bf16.mxu0 0
    %990 = vmatpush1.bf16.msra.mxu0 0
    %991 = vmatprep.subr.bf16.mxu0 0
    %992 = vmatpush1.bf16.msra.mxu0 0
    %993 = vmatprep.subr.bf16.mxu0 0
    %994 = vmatpush1.bf16.msra.mxu0 0
    %995 = vmatprep.subr.bf16.mxu0 0
    %996 = vmatpush1.bf16.msra.mxu0 %v977
    %997 = vmatprep.subr.bf16.mxu0 0
    %998 = vmatpush1.bf16.msra.mxu0 %v976
    %999 = vmatprep.subr.bf16.mxu0 0
    %1000 = vmatpush2.bf16.msra.mxu0 0
    %1001 = vmatprep.subr.bf16.mxu0 0
    %1002 = vmatpush2.bf16.msra.mxu0 0
    %1003 = vmatprep.subr.bf16.mxu0 0
    %1004 = vmatpush2.bf16.msra.mxu0 0
    %1005 = vmatprep.subr.bf16.mxu0 0
    %1006 = vmatpush2.bf16.msra.mxu0 0
    %1007 = vmatprep.subr.bf16.mxu0 0
    %1008 = vmatpush2.bf16.msra.mxu0 0
    %1009 = vmatprep.subr.bf16.mxu0 0
    %1010 = vmatpush2.bf16.msra.mxu0 0
    %1011 = vmatprep.subr.bf16.mxu0 0
    %1012 = vmatpush2.bf16.msra.mxu0 0
    %1013 = vmatprep.subr.bf16.mxu0 0
    %1014 = vmatpush2.bf16.msra.mxu0 0
    %1015 = vmatprep.mubr.bf16.mxu0 0
    %1016 = vmatmul.mubr.bf16.gmra.mxu0 %v981
    %v1017 = vpop.f32.mrf.mxu0
    %v1018 = vadd.f32 0.0, %v1017
    %v1019 = vpop.f32.mrf.mxu0
    %v1020 = vpop.f32.mrf.mxu0
    %v1021 = vadd.f32 0.0, %v1020
    %v1022 = vpop.f32.mrf.mxu0
    %1023 = vdwg.mxu0
    %s1024 = sld [smem:[#allocation6 + $0x30]]
    %v1025 = vstv %s1024
    %v1026 = vmul.f32 %v1025, %v1018
    %v1027 = vmul.f32 %v1025, %v1021
    %s1028 = sld [smem:[#allocation6 + $0x31]]
    %v1029 = vstv %s1028
    %v1030 = vmul.f32 %v1029, %v1018
    %v1031 = vmul.f32 %v1029, %v1021
    %1034 = vrot.lane.b32.xlu0 %v1030, 96
    %v1035 = vpop.permute.xlu0 %1034
    %1036 = vrot.lane.b32.xlu0 %v1031, 96
    %v1037 = vpop.permute.xlu0 %1036
    %v1040 = vadd.f32 %v1026, %v1035
    %v1041 = vadd.f32 %v1027, %v1037
    %s1042 = sld [smem:[#allocation6 + $0x32]]
    %v1043 = vstv %s1042
    %v1044 = vmul.f32 %v1043, %v1018
    %v1045 = vmul.f32 %v1043, %v1021
    %s1046 = sld [smem:[#allocation6 + $0x33]]
    %v1047 = vstv %s1046
    %v1048 = vmul.f32 %v1047, %v1018
    %v1049 = vmul.f32 %v1047, %v1021
    %1052 = vrot.lane.b32.xlu0 %v1048, 96
    %v1053 = vpop.permute.xlu0 %1052
    %1054 = vrot.lane.b32.xlu0 %v1049, 96
    %v1055 = vpop.permute.xlu0 %1054
    %v1058 = vadd.f32 %v1044, %v1053
    %v1059 = vadd.f32 %v1045, %v1055
    %s1060 = sld [smem:[#allocation6 + $0x34]]
    %v1061 = vstv %s1060
    %v1062 = vmul.f32 %v1061, %v1018
    %v1063 = vmul.f32 %v1061, %v1021
    %s1064 = sld [smem:[#allocation6 + $0x35]]
    %v1065 = vstv %s1064
    %v1066 = vmul.f32 %v1065, %v1018
    %v1067 = vmul.f32 %v1065, %v1021
    %1070 = vrot.lane.b32.xlu0 %v1066, 96
    %v1071 = vpop.permute.xlu0 %1070
    %1072 = vrot.lane.b32.xlu0 %v1067, 96
    %v1073 = vpop.permute.xlu0 %1072
    %v1076 = vadd.f32 %v1062, %v1071
    %v1077 = vadd.f32 %v1063, %v1073
    %s1078 = sld [smem:[#allocation6 + $0x36]]
    %v1079 = vstv %s1078
    %v1080 = vmul.f32 %v1079, %v1018
    %v1081 = vmul.f32 %v1079, %v1021
    %s1082 = sld [smem:[#allocation6 + $0x37]]
    %v1083 = vstv %s1082
    %v1084 = vmul.f32 %v1083, %v1018
    %v1085 = vmul.f32 %v1083, %v1021
    %1088 = vrot.lane.b32.xlu0 %v1084, 96
    %v1089 = vpop.permute.xlu0 %1088
    %1090 = vrot.lane.b32.xlu0 %v1085, 96
    %v1091 = vpop.permute.xlu0 %1090
    %v1094 = vadd.f32 %v1080, %v1089
    %v1095 = vadd.f32 %v1081, %v1091
    %s1096 = sld [smem:[#allocation6 + $0x38]]
    %v1097 = vstv %s1096
    %v1098 = vmul.f32 %v1097, %v1018
    %v1099 = vmul.f32 %v1097, %v1021
    %s1100 = sld [smem:[#allocation6 + $0x39]]
    %v1101 = vstv %s1100
    %v1102 = vmul.f32 %v1101, %v1018
    %v1103 = vmul.f32 %v1101, %v1021
    %1106 = vrot.lane.b32.xlu0 %v1102, 96
    %v1107 = vpop.permute.xlu0 %1106
    %1108 = vrot.lane.b32.xlu0 %v1103, 96
    %v1109 = vpop.permute.xlu0 %1108
    %v1112 = vadd.f32 %v1098, %v1107
    %v1113 = vadd.f32 %v1099, %v1109
    %s1114 = sld [smem:[#allocation6 + $0x3a]]
    %v1115 = vstv %s1114
    %v1116 = vmul.f32 %v1115, %v1018
    %v1117 = vmul.f32 %v1115, %v1021
    %s1118 = sld [smem:[#allocation6 + $0x3b]]
    %v1119 = vstv %s1118
    %v1120 = vmul.f32 %v1119, %v1018
    %v1121 = vmul.f32 %v1119, %v1021
    %1124 = vrot.lane.b32.xlu0 %v1120, 96
    %v1125 = vpop.permute.xlu0 %1124
    %1126 = vrot.lane.b32.xlu0 %v1121, 96
    %v1127 = vpop.permute.xlu0 %1126
    %v1130 = vadd.f32 %v1116, %v1125
    %v1131 = vadd.f32 %v1117, %v1127
    %s1132 = sld [smem:[#allocation6 + $0x3c]]
    %v1133 = vstv %s1132
    %v1134 = vmul.f32 %v1133, %v1018
    %v1135 = vmul.f32 %v1133, %v1021
    %s1136 = sld [smem:[#allocation6 + $0x3d]]
    %v1137 = vstv %s1136
    %v1138 = vmul.f32 %v1137, %v1018
    %v1139 = vmul.f32 %v1137, %v1021
    %1142 = vrot.lane.b32.xlu0 %v1138, 96
    %v1143 = vpop.permute.xlu0 %1142
    %1144 = vrot.lane.b32.xlu0 %v1139, 96
    %v1145 = vpop.permute.xlu0 %1144
    %v1148 = vadd.f32 %v1134, %v1143
    %v1149 = vadd.f32 %v1135, %v1145
    %s1150 = sld [smem:[#allocation6 + $0x3e]]
    %v1151 = vstv %s1150
    %v1152 = vmul.f32 %v1151, %v1018
    %v1153 = vmul.f32 %v1151, %v1021
    %s1154 = sld [smem:[#allocation6 + $0x3f]]
    %v1155 = vstv %s1154
    %v1156 = vmul.f32 %v1155, %v1018
    %v1157 = vmul.f32 %v1155, %v1021
    %1160 = vrot.lane.b32.xlu0 %v1156, 96
    %v1161 = vpop.permute.xlu0 %1160
    %1162 = vrot.lane.b32.xlu0 %v1157, 96
    %v1163 = vpop.permute.xlu0 %1162
    %v1166 = vadd.f32 %v1152, %v1161
    %v1167 = vadd.f32 %v1153, %v1163
    %v1168 = vpack.c.bf16 %v1041, %v1040
    %v1169 = vpack.c.bf16 %v1059, %v1058
    %v1170 = vpack.c.bf16 %v1077, %v1076
    %v1171 = vpack.c.bf16 %v1095, %v1094
    %v1172 = vpack.c.bf16 %v1113, %v1112
    %v1173 = vpack.c.bf16 %v1131, %v1130
    %v1174 = vpack.c.bf16 %v1149, %v1148
    %v1175 = vpack.c.bf16 %v1167, %v1166
    %1184 = vrot.lane.b32.xlu0 %v1168, 96
    %v1185 = vpop.permute.xlu0 %1184
    %1186 = vrot.lane.b32.xlu0 %v1169, 96
    %v1187 = vpop.permute.xlu0 %1186
    %1188 = vrot.lane.b32.xlu0 %v1170, 96
    %v1189 = vpop.permute.xlu0 %1188
    %1190 = vrot.lane.b32.xlu0 %v1171, 96
    %v1191 = vpop.permute.xlu0 %1190
    %1192 = vrot.lane.b32.xlu0 %v1172, 96
    %v1193 = vpop.permute.xlu0 %1192
    %1194 = vrot.lane.b32.xlu0 %v1173, 96
    %v1195 = vpop.permute.xlu0 %1194
    %1196 = vrot.lane.b32.xlu0 %v1174, 96
    %v1197 = vpop.permute.xlu0 %1196
    %1198 = vrot.lane.b32.xlu0 %v1175, 96
    %v1199 = vpop.permute.xlu0 %1198
    %1208 = vmatprep.subr.bf16.mxu0 0
    %1209 = vmatpush1.bf16.msra.mxu0 %v1199
    %1210 = vmatprep.subr.bf16.mxu0 0
    %1211 = vmatpush1.bf16.msra.mxu0 %v1197
    %1212 = vmatprep.subr.bf16.mxu0 0
    %1213 = vmatpush1.bf16.msra.mxu0 %v1195
    %1214 = vmatprep.subr.bf16.mxu0 0
    %1215 = vmatpush1.bf16.msra.mxu0 %v1193
    %1216 = vmatprep.subr.bf16.mxu0 0
    %1217 = vmatpush1.bf16.msra.mxu0 %v1191
    %1218 = vmatprep.subr.bf16.mxu0 0
    %1219 = vmatpush1.bf16.msra.mxu0 %v1189
    %1220 = vmatprep.subr.bf16.mxu0 0
    %1221 = vmatpush1.bf16.msra.mxu0 %v1187
    %1222 = vmatprep.subr.bf16.mxu0 0
    %1223 = vmatpush1.bf16.msra.mxu0 %v1185
    %1224 = vmatprep.subr.bf16.mxu0 0
    %1225 = vmatpush2.bf16.msra.mxu0 0
    %1226 = vmatprep.subr.bf16.mxu0 0
    %1227 = vmatpush2.bf16.msra.mxu0 0
    %1228 = vmatprep.subr.bf16.mxu0 0
    %1229 = vmatpush2.bf16.msra.mxu0 0
    %1230 = vmatprep.subr.bf16.mxu0 0
    %1231 = vmatpush2.bf16.msra.mxu0 0
    %1232 = vmatprep.subr.bf16.mxu0 0
    %1233 = vmatpush2.bf16.msra.mxu0 0
    %1234 = vmatprep.subr.bf16.mxu0 0
    %1235 = vmatpush2.bf16.msra.mxu0 0
    %1236 = vmatprep.subr.bf16.mxu0 0
    %1237 = vmatpush2.bf16.msra.mxu0 0
    %1238 = vmatprep.subr.bf16.mxu0 0
    %1239 = vmatpush2.bf16.msra.mxu0 0
    %1240 = vmatprep.mubr.bf16.mxu0 0
    %1241 = vmatmul.mubr.bf16.gmra.mxu0 %v282
    %v1242 = vpop.f32.mrf.mxu0
    %v1243 = vadd.f32 %v1018, %v1242
    %v1244 = vpop.f32.mrf.mxu0
    %v1245 = vpop.f32.mrf.mxu0
    %v1246 = vadd.f32 %v1021, %v1245
    %v1247 = vpop.f32.mrf.mxu0
    %1248 = vdwg.mxu0
    %v1249 = vld [vmem:[%s11] sm:$0x1]
    %v1251 = vlaneseq
    %v1252 = vshrl.u32 %v1251, 7
    %v1253 = vsub.s32 0, %v1252
    %v1254 = vrot.slane %v1249, %v1253
    %v1256 = vadd.f32 %v1243, %v1254
    %v1257 = vadd.f32 %v1246, %v1254
    %v1258 = vtanh.pop %v1256
    %v1259 = vtanh.pop %v1257
    %1262 = vrot.lane.b32.xlu0 %v664, 32
    %v1263 = vpop.permute.xlu0 %1262
    %1264 = vrot.lane.b32.xlu0 %v665, 32
    %v1265 = vpop.permute.xlu0 %1264
    %1270 = vrot.lane.b32.xlu0 %v961, 64
    %v1271 = vpop.permute.xlu0 %1270
    %1272 = vrot.lane.b32.xlu0 %v962, 64
    %v1273 = vpop.permute.xlu0 %1272
    %1278 = vrot.lane.b32.xlu0 %v1258, 96
    %v1279 = vpop.permute.xlu0 %1278
    %1280 = vrot.lane.b32.xlu0 %v1259, 96
    %v1281 = vpop.permute.xlu0 %1280
    %v1284 = vsel %vm385, %v366, %v1263
    %v1285 = vsel %vm385, %v367, %v1265
    %vm1286 = vcmask 523264
    %v1287 = vsel %vm1286, %v1284, %v1271
    %v1288 = vsel %vm1286, %v1285, %v1273
    %vm1289 = vcmask 785408
    %v1290 = vsel %vm1289, %v1287, %v1279
    %v1291 = vsel %vm1289, %v1288, %v1281
    %v1292 = vpack.c.bf16 %v1291, %v1290
    %v1293 = vld [vmem:[%s13] sm:$0xf]
    %v1294 = vld [vmem:[%s13 + $0x4] sm:$0xf]
    %v1295 = vld [vmem:[%s13 + $0x8] sm:$0xf]
    %v1296 = vld [vmem:[%s13 + $0xc] sm:$0xf]
    %v1297 = vld [vmem:[%s13 + $0x10] sm:$0xf]
    %v1298 = vld [vmem:[%s13 + $0x14] sm:$0xf]
    %v1299 = vld [vmem:[%s13 + $0x18] sm:$0xf]
    %v1300 = vld [vmem:[%s13 + $0x1c] sm:$0xf]
    %v1301 = vld [vmem:[%s13 + $0x20] sm:$0xf]
    %v1302 = vld [vmem:[%s13 + $0x24] sm:$0xf]
    %v1303 = vld [vmem:[%s13 + $0x28] sm:$0xf]
    %v1304 = vld [vmem:[%s13 + $0x2c] sm:$0xf]
    %v1305 = vld [vmem:[%s13 + $0x30] sm:$0xf]
    %v1306 = vld [vmem:[%s13 + $0x34] sm:$0xf]
    %v1307 = vld [vmem:[%s13 + $0x38] sm:$0xf]
    %v1308 = vld [vmem:[%s13 + $0x3c] sm:$0xf]
    %v1325 = vunpack.c.l.b16 %v1293
    %v1326 = vunpack.c.l.b16 %v1294
    %v1327 = vunpack.c.l.b16 %v1295
    %v1328 = vunpack.c.l.b16 %v1296
    %v1329 = vunpack.c.l.b16 %v1297
    %v1330 = vunpack.c.l.b16 %v1298
    %v1331 = vunpack.c.l.b16 %v1299
    %v1332 = vunpack.c.l.b16 %v1300
    %v1333 = vunpack.c.l.b16 %v1301
    %v1334 = vunpack.c.l.b16 %v1302
    %v1335 = vunpack.c.l.b16 %v1303
    %v1336 = vunpack.c.l.b16 %v1304
    %v1337 = vunpack.c.l.b16 %v1305
    %v1338 = vunpack.c.l.b16 %v1306
    %v1339 = vunpack.c.l.b16 %v1307
    %v1340 = vunpack.c.l.b16 %v1308
    %v1341 = vpack.c.b16 %v1326, %v1325
    %v1342 = vpack.c.b16 %v1328, %v1327
    %v1343 = vpack.c.b16 %v1330, %v1329
    %v1344 = vpack.c.b16 %v1332, %v1331
    %v1345 = vpack.c.b16 %v1334, %v1333
    %v1346 = vpack.c.b16 %v1336, %v1335
    %v1347 = vpack.c.b16 %v1338, %v1337
    %v1348 = vpack.c.b16 %v1340, %v1339
    %1357 = vmatprep.subr.bf16.mxu0 0
    %1358 = vmatpush1.bf16.msra.mxu0 %v1348
    %1359 = vmatprep.subr.bf16.mxu0 0
    %1360 = vmatpush1.bf16.msra.mxu0 %v1347
    %1361 = vmatprep.subr.bf16.mxu0 0
    %1362 = vmatpush1.bf16.msra.mxu0 %v1346
    %1363 = vmatprep.subr.bf16.mxu0 0
    %1364 = vmatpush1.bf16.msra.mxu0 %v1345
    %1365 = vmatprep.subr.bf16.mxu0 0
    %1366 = vmatpush1.bf16.msra.mxu0 %v1344
    %1367 = vmatprep.subr.bf16.mxu0 0
    %1368 = vmatpush1.bf16.msra.mxu0 %v1343
    %1369 = vmatprep.subr.bf16.mxu0 0
    %1370 = vmatpush1.bf16.msra.mxu0 %v1342
    %1371 = vmatprep.subr.bf16.mxu0 0
    %1372 = vmatpush1.bf16.msra.mxu0 %v1341
    %1373 = vmatprep.subr.bf16.mxu0 0
    %1374 = vmatpush2.bf16.msra.mxu0 0
    %1375 = vmatprep.subr.bf16.mxu0 0
    %1376 = vmatpush2.bf16.msra.mxu0 0
    %1377 = vmatprep.subr.bf16.mxu0 0
    %1378 = vmatpush2.bf16.msra.mxu0 0
    %1379 = vmatprep.subr.bf16.mxu0 0
    %1380 = vmatpush2.bf16.msra.mxu0 0
    %1381 = vmatprep.subr.bf16.mxu0 0
    %1382 = vmatpush2.bf16.msra.mxu0 0
    %1383 = vmatprep.subr.bf16.mxu0 0
    %1384 = vmatpush2.bf16.msra.mxu0 0
    %1385 = vmatprep.subr.bf16.mxu0 0
    %1386 = vmatpush2.bf16.msra.mxu0 0
    %1387 = vmatprep.subr.bf16.mxu0 0
    %1388 = vmatpush2.bf16.msra.mxu0 0
    %1389 = vmatprep.mubr.bf16.mxu0 0
    %1390 = vmatmul.mubr.bf16.gmra.mxu0 %v1292
    %v1391 = vpop.f32.mrf.mxu0
    %v1392 = vadd.f32 0.0, %v1391
    %v1393 = vpop.f32.mrf.mxu0
    %v1394 = vpop.f32.mrf.mxu0
    %v1395 = vadd.f32 0.0, %v1394
    %v1396 = vpop.f32.mrf.mxu0
    %1397 = vdwg.mxu0
    %v1398 = vlaneseq
    %v1399 = vshrl.u32 %v1398, 7
    %v1400 = vadd.s32 %v1399, 8
    %s1401 = sld [smem:[#allocation5]]
    %s1402 = sld [smem:[#allocation3]]
    %s1403 = sld [smem:[#allocation4]]
    %v1404 = vstv %s1402
    %vm1405 = vcmp.eq.s32.totalorder %v1399, %v1404
    %vm1406 = vcmp.eq.s32.totalorder %v1400, %v1404
    %v1407 = vsel %vm1405, %v1392, 0.0
    %v1408 = vsel %vm1406, %v1395, 0.0
    %vm1409 = vcmask 7168
    %v1410 = vsel %vm1409, %v1407, 0.0
    %v1411 = vsel %vm1409, %v1408, 0.0
    %v1412 = vadd.f32 %v1410, %v1411
    %1413 = vadd.xlane.f32.xlu0 %v1412
    %v1414 = vpop.xlane.xlu0 %1413
    %v1415 = vrot.slane %v1414, 4
    %v1416 = vadd.f32 %v1414, %v1415
    %v1417 = vrot.slane %v1416, 2
    %v1418 = vadd.f32 %v1416, %v1417
    %v1419 = vrot.slane %v1418, 1
    %v1420 = vadd.f32 %v1418, %v1419
    %s1421 = vtos %v1420
    %v1422 = vstv %s1403
    %vm1423 = vcmp.eq.s32.totalorder %v1399, %v1422
    %vm1424 = vcmp.eq.s32.totalorder %v1400, %v1422
    %v1425 = vsel %vm1423, %v1392, 0.0
    %v1426 = vsel %vm1424, %v1395, 0.0
    %1429 = vrot.lane.b32.xlu0 %v1425, 127
    %v1430 = vpop.permute.xlu0 %1429
    %1431 = vrot.lane.b32.xlu0 %v1426, 127
    %v1432 = vpop.permute.xlu0 %1431
    %v1435 = vsel %vm1409, %v1430, 0.0
    %v1436 = vsel %vm1409, %v1432, 0.0
    %v1437 = vadd.f32 %v1435, %v1436
    %1438 = vadd.xlane.f32.xlu0 %v1437
    %v1439 = vpop.xlane.xlu0 %1438
    %v1440 = vrot.slane %v1439, 4
    %v1441 = vadd.f32 %v1439, %v1440
    %v1442 = vrot.slane %v1441, 2
    %v1443 = vadd.f32 %v1441, %v1442
    %v1444 = vrot.slane %v1443, 1
    %v1445 = vadd.f32 %v1443, %v1444
    %s1446 = vtos %v1445
    %vm1447 = vcmp.eq.s32.totalorder %v1399, 0
    %s1448 = sadd.f32 %s1421, %s1446
    %v1449 = vstv %s1448
    %v1450 = vsel %vm1447, %v1449, 0.0
    %s1451 = sld [smem:[#allocation3 + $0x1]]
    %s1452 = sld [smem:[#allocation4 + $0x1]]
    %v1453 = vstv %s1451
    %vm1454 = vcmp.eq.s32.totalorder %v1399, %v1453
    %vm1455 = vcmp.eq.s32.totalorder %v1400, %v1453
    %v1456 = vsel %vm1454, %v1392, 0.0
    %v1457 = vsel %vm1455, %v1395, 0.0
    %v1458 = vsel %vm1409, %v1456, 0.0
    %v1459 = vsel %vm1409, %v1457, 0.0
    %v1460 = vadd.f32 %v1458, %v1459
    %1461 = vadd.xlane.f32.xlu0 %v1460
    %v1462 = vpop.xlane.xlu0 %1461
    %v1463 = vrot.slane %v1462, 4
    %v1464 = vadd.f32 %v1462, %v1463
    %v1465 = vrot.slane %v1464, 2
    %v1466 = vadd.f32 %v1464, %v1465
    %v1467 = vrot.slane %v1466, 1
    %v1468 = vadd.f32 %v1466, %v1467
    %s1469 = vtos %v1468
    %v1470 = vstv %s1452
    %vm1471 = vcmp.eq.s32.totalorder %v1399, %v1470
    %vm1472 = vcmp.eq.s32.totalorder %v1400, %v1470
    %v1473 = vsel %vm1471, %v1392, 0.0
    %v1474 = vsel %vm1472, %v1395, 0.0
    %1477 = vrot.lane.b32.xlu0 %v1473, 127
    %v1478 = vpop.permute.xlu0 %1477
    %1479 = vrot.lane.b32.xlu0 %v1474, 127
    %v1480 = vpop.permute.xlu0 %1479
    %v1483 = vsel %vm1409, %v1478, 0.0
    %v1484 = vsel %vm1409, %v1480, 0.0
    %v1485 = vadd.f32 %v1483, %v1484
    %1486 = vadd.xlane.f32.xlu0 %v1485
    %v1487 = vpop.xlane.xlu0 %1486
    %v1488 = vrot.slane %v1487, 4
    %v1489 = vadd.f32 %v1487, %v1488
    %v1490 = vrot.slane %v1489, 2
    %v1491 = vadd.f32 %v1489, %v1490
    %v1492 = vrot.slane %v1491, 1
    %v1493 = vadd.f32 %v1491, %v1492
    %s1494 = vtos %v1493
    %vm1495 = vcmp.eq.s32.totalorder %v1399, 1
    %s1496 = sadd.f32 %s1469, %s1494
    %v1497 = vstv %s1496
    %v1498 = vsel %vm1495, %v1497, %v1450
    %v1499 = vstv %s1401
    %v1500 = vadd.f32 %v1498, %v1499
    %v1501 = vxor.u32 %v1500, 2147483648
    %v1502 = vmul.f32 %v1501, 1.442695
    %v1503 = vpow.pop %v1502
    %v1504 = vadd.f32 %v1503, 1.0
    %v1505 = vrcp.pop %v1504
    %v1506 = vmul.f32 1.0, %v1505
    %vm1507 = vcmask 1024
    %1508 = vst.msk [vmem:[%s15] sm:$0x3] %vm1507, %v1506
    // Predicated region
    $region58: #{tpu_custom_call.1} parent=1 // pred_check
      _
    $region59: #{tpu_custom_call.1} parent=1 // pred_check_branch
      %1510 = sbr.rel (0) target = $region61
    $region60: #{tpu_custom_call.1} parent=1 // pred_region
      _
    $region61: #{tpu_custom_call.1} parent=1 // pred_fallthru
      _
    // Predicated region
    $region62: #{tpu_custom_call.1} parent=1 // pred_check
      _
    $region63: #{tpu_custom_call.1} parent=1 // pred_check_branch
      %1512 = sbr.rel (0) target = $region65
    $region64: #{tpu_custom_call.1} parent=1 // pred_region
      _
    $region65: #{tpu_custom_call.1} parent=1 // pred_fallthru
      _
    %1513 = vsyncpa [#allocation7], 1

</llo_original>
